<compile_context>
chip_gen: v7x
topology: tpu7x:2x2x1
jax: 0.10.0
libtpu: 0.0.40
codegen_flags: <defaults>
</compile_context>

<pallas_src>
import functools
import math

import jax
import jax.numpy as jnp
from jax.experimental import pallas as pl
from jax.experimental.pallas import tpu as pltpu


# ----------------------------- fused kernel -----------------------------

def _fused_bert_kernel(*refs, B, S, heads, head_dim, eps, has_hidden):
    if has_hidden:
        (ids_ref, wemb_ref, pt_ref, bias_ref,
         wqkv_ref, wo_ref, wff1_ref, wff2_ref, lvec_ref,
         pw_ref, hvec_ref, ew_ref, eb_ref, hw_ref, hb_ref,
         o_ref, x_scr) = refs
    else:
        (ids_ref, wemb_ref, pt_ref, bias_ref,
         wqkv_ref, wo_ref, wff1_ref, wff2_ref, lvec_ref,
         pw_ref, hvec_ref, cw_ref, cb_ref,
         o_ref, x_scr) = refs

    lyr = pl.program_id(0)
    n_layers = pl.num_programs(0)
    D = heads * head_dim
    BS = B * S
    I = wff1_ref.shape[2]
    V = wemb_ref.shape[0]
    scale = 1.0 / math.sqrt(head_dim)

    def layernorm(x, g, b):
        mu = jnp.mean(x, axis=-1, keepdims=True)
        var = jnp.mean(jnp.square(x - mu), axis=-1, keepdims=True)
        return (x - mu) * jax.lax.rsqrt(var + eps) * g + b

    # --- embeddings (one-hot MXU gather) + embedding LayerNorm, first layer step only ---
    @pl.when(lyr == 0)
    def _():
        ids = ids_ref[...]                                           # [BS, 1] int32
        iota = jax.lax.broadcasted_iota(jnp.int32, (BS, V), 1)
        onehot = jnp.where(iota == ids, 1.0, 0.0)                    # [BS, V]
        emb = jnp.dot(onehot, wemb_ref[...],
                      preferred_element_type=jnp.float32) + pt_ref[...]
        x_scr[...] = layernorm(emb, hvec_ref[0:1, :], hvec_ref[1:2, :])

    # --- one encoder layer over all B sequences at once ([BS, D] activation carry) ---
    x = x_scr[...]                                                   # [BS, D]
    wqkv = wqkv_ref[lyr]          # [D, 3D]   all layers VMEM-resident, indexed in-kernel
    wo = wo_ref[lyr]              # [D, D]
    wff1 = wff1_ref[lyr]          # [D, I]
    wff2 = wff2_ref[lyr]          # [I, D]
    vec = lvec_ref[lyr]           # [8, VW]   packed per-layer bias / LN vectors
    bqkv, bo = vec[0:1, :3 * D], vec[1:2, :D]
    g1, b1 = vec[2:3, :D], vec[3:4, :D]
    bff1, bff2 = vec[4:5, :I], vec[5:6, :D]
    g2, b2 = vec[6:7, :D], vec[7:8, :D]

    # fused QKV projection
    qkv = jnp.dot(x, wqkv, preferred_element_type=jnp.float32) + bqkv   # [BS, 3D]
    bias = bias_ref[...]          # [BS, BS] additive mask: key padding + block-diag batch mask

    attn = None
    for h in range(heads):        # static, unrolled (heads=2)
        q = qkv[:, h * head_dim:(h + 1) * head_dim]
        k = qkv[:, D + h * head_dim:D + (h + 1) * head_dim]
        v = qkv[:, 2 * D + h * head_dim:2 * D + (h + 1) * head_dim]
        # q @ k^T without an explicit transpose
        s = jax.lax.dot_general(q, k, (((1,), (1,)), ((), ())),
                                preferred_element_type=jnp.float32) * scale + bias
        m = jnp.max(s, axis=-1, keepdims=True)
        p = jnp.exp(s - m)
        p = p * pl.reciprocal(jnp.sum(p, axis=-1, keepdims=True), approx=True)
        ctx = jnp.dot(p, v, preferred_element_type=jnp.float32)         # [BS, Dh]
        # fold the head directly into the output projection (no concat)
        part = jnp.dot(ctx, wo[h * head_dim:(h + 1) * head_dim, :],
                       preferred_element_type=jnp.float32)              # [BS, D]
        attn = part if attn is None else attn + part
    attn = attn + bo
    x = layernorm(attn + x, g1, b1)

    # --- feed-forward block ---
    hmid = jnp.dot(x, wff1, preferred_element_type=jnp.float32) + bff1   # [BS, I]
    c = math.sqrt(2.0 / math.pi)
    hmid = 0.5 * hmid * (1.0 + jnp.tanh(c * (hmid + 0.044715 * hmid * hmid * hmid)))
    ff = jnp.dot(hmid, wff2, preferred_element_type=jnp.float32) + bff2  # [BS, D]
    x = layernorm(ff + x, g2, b2)
    x_scr[...] = x

    # --- epilogue on the last layer: [CLS] rows -> pooler(tanh) -> classifier head ---
    @pl.when(lyr == n_layers - 1)
    def _():
        cls = jnp.concatenate([x[b * S:b * S + 1, :] for b in range(B)], axis=0)  # [B, D]
        pooled = jnp.tanh(
            jnp.dot(cls, pw_ref[...], preferred_element_type=jnp.float32) + hvec_ref[2:3, :])
        if has_hidden:
            hid = jnp.maximum(
                jnp.dot(pooled, ew_ref[...], preferred_element_type=jnp.float32) + eb_ref[...],
                0.0)
            logits = jnp.dot(hid, hw_ref[...], preferred_element_type=jnp.float32) + hb_ref[...]
        else:
            logits = jnp.dot(pooled, cw_ref[...], preferred_element_type=jnp.float32) + cb_ref[...]
        o_ref[...] = logits


# ----------------------------- model definition -----------------------------

CFG = dict(
    vocab_size=100,
    type_vocab_size=2,
    max_position=16,
    hidden=32,          # BERT hidden size
    heads=2,
    layers=2,
    intermediate=64,
    n_classes=2,
    classifier_hidden=None,   # hidden_size=None -> single Linear head (module default)
)


def init_params(key, cfg):
    def nrm(k, shape):
        return 0.02 * jax.random.normal(k, shape, dtype=jnp.float32)

    D, I, L = cfg["hidden"], cfg["intermediate"], cfg["layers"]
    keys = iter(jax.random.split(key, 64))
    p = {
        "word_emb": nrm(next(keys), (cfg["vocab_size"], D)),
        "pos_emb": nrm(next(keys), (cfg["max_position"], D)),
        "type_emb": nrm(next(keys), (cfg["type_vocab_size"], D)),
        "emb_ln_g": jnp.ones((1, D), jnp.float32),
        "emb_ln_b": jnp.zeros((1, D), jnp.float32),
        # per-layer weights stacked on a leading L axis; linears pre-transposed to [in, out];
        # Q/K/V concatenated on the output axis.
        "wqkv": nrm(next(keys), (L, D, 3 * D)),
        "bqkv": jnp.zeros((L, 1, 3 * D), jnp.float32),
        "wo": nrm(next(keys), (L, D, D)),
        "bo": jnp.zeros((L, 1, D), jnp.float32),
        "ln1_g": jnp.ones((L, 1, D), jnp.float32),
        "ln1_b": jnp.zeros((L, 1, D), jnp.float32),
        "wff1": nrm(next(keys), (L, D, I)),
        "bff1": jnp.zeros((L, 1, I), jnp.float32),
        "wff2": nrm(next(keys), (L, I, D)),
        "bff2": jnp.zeros((L, 1, D), jnp.float32),
        "ln2_g": jnp.ones((L, 1, D), jnp.float32),
        "ln2_b": jnp.zeros((L, 1, D), jnp.float32),
        "pool_w": nrm(next(keys), (D, D)),
        "pool_b": jnp.zeros((1, D), jnp.float32),
    }
    if cfg["classifier_hidden"] is None:
        p["cls_w"] = nrm(next(keys), (D, cfg["n_classes"]))
        p["cls_b"] = jnp.zeros((1, cfg["n_classes"]), jnp.float32)
    else:
        Hc = cfg["classifier_hidden"]
        p["e2h_w"] = nrm(next(keys), (D, Hc))
        p["e2h_b"] = jnp.zeros((1, Hc), jnp.float32)
        p["h2l_w"] = nrm(next(keys), (Hc, cfg["n_classes"]))
        p["h2l_b"] = jnp.zeros((1, cfg["n_classes"]), jnp.float32)
    return p


def pack_params(params, cfg, batch, seq):
    """One-time host-side packing of tiny operands (run once, outside jit)."""
    D, I, L = cfg["hidden"], cfg["intermediate"], cfg["layers"]
    VW = max(3 * D, I)

    # per-layer vectors -> [L, 8, VW], one (lane-padded) row each
    rows = []
    for name in ["bqkv", "bo", "ln1_g", "ln1_b", "bff1", "bff2", "ln2_g", "ln2_b"]:
        v = params[name].reshape(L, 1, -1)
        rows.append(jnp.pad(v, ((0, 0), (0, 0), (0, VW - v.shape[-1]))))
    layer_vecs = jnp.concatenate(rows, axis=1)                       # [L, 8, VW]

    head_vecs = jnp.concatenate(
        [params["emb_ln_g"], params["emb_ln_b"], params["pool_b"]], axis=0)  # [3, D]

    # position + token-type-0 embeddings, pre-summed and tiled to [B*S, D]
    pos_type = params["pos_emb"][:seq] + params["type_emb"][0:1]
    pos_type = jnp.tile(pos_type, (batch, 1))                        # [B*S, D]

    # block-diagonal batch mask (keys from other batches get -10000 -> exp underflows to 0)
    batch_of = jnp.repeat(jnp.arange(batch), seq)
    blockdiag = jnp.where(batch_of[:, None] == batch_of[None, :],
                          0.0, -10000.0).astype(jnp.float32)         # [B*S, B*S]

    packed = dict(
        word_emb=params["word_emb"], pos_type=pos_type, blockdiag=blockdiag,
        wqkv=params["wqkv"], wo=params["wo"], wff1=params["wff1"], wff2=params["wff2"],
        layer_vecs=layer_vecs, pool_w=params["pool_w"], head_vecs=head_vecs,
    )
    if cfg["classifier_hidden"] is None:
        packed["cls_w"], packed["cls_b"] = params["cls_w"], params["cls_b"]
    else:
        packed["e2h_w"], packed["e2h_b"] = params["e2h_w"], params["e2h_b"]
        packed["h2l_w"], packed["h2l_b"] = params["h2l_w"], params["h2l_b"]
    return packed


def sentence_classifier_forward(packed, input_ids, attention_mask, cfg):
    B, S = input_ids.shape
    D, H, L, I, C = cfg["hidden"], cfg["heads"], cfg["layers"], cfg["intermediate"], cfg["n_classes"]
    Dh = D // H
    BS = B * S
    V = packed["word_emb"].shape[0]
    VW = packed["layer_vecs"].shape[-1]
    has_hidden = cfg["classifier_hidden"] is not None

    ids = input_ids.reshape(BS, 1).astype(jnp.int32)
    # key-padding bias over flattened keys + cross-batch block-diagonal mask
    key_bias = ((1.0 - attention_mask.astype(jnp.float32)) * -10000.0).reshape(1, BS)
    attn_bias = packed["blockdiag"] + key_bias                       # [BS, BS]

    kernel = functools.partial(
        _fused_bert_kernel, B=B, S=S, heads=H, head_dim=Dh, eps=1e-12, has_hidden=has_hidden)

    in_arrays = [ids, packed["word_emb"], packed["pos_type"], attn_bias,
                 packed["wqkv"], packed["wo"], packed["wff1"], packed["wff2"],
                 packed["layer_vecs"], packed["pool_w"], packed["head_vecs"]]
    in_specs = [
        pl.BlockSpec((BS, 1), lambda l: (0, 0)),           # token ids (in-kernel gather)
        pl.BlockSpec((V, D), lambda l: (0, 0)),            # word embedding table (resident)
        pl.BlockSpec((BS, D), lambda l: (0, 0)),           # pos + type-0 embeddings (tiled)
        pl.BlockSpec((BS, BS), lambda l: (0, 0)),          # additive attention bias
        pl.BlockSpec((L, D, 3 * D), lambda l: (0, 0, 0)),  # all-layer fused QKV weights (resident)
        pl.BlockSpec((L, D, D), lambda l: (0, 0, 0)),      # all-layer attn output weights
        pl.BlockSpec((L, D, I), lambda l: (0, 0, 0)),      # all-layer FFN up weights
        pl.BlockSpec((L, I, D), lambda l: (0, 0, 0)),      # all-layer FFN down weights
        pl.BlockSpec((L, 8, VW), lambda l: (0, 0, 0)),     # packed per-layer bias/LN vectors
        pl.BlockSpec((D, D), lambda l: (0, 0)),            # pooler weight
        pl.BlockSpec((3, D), lambda l: (0, 0)),            # emb LN gamma/beta + pooler bias
    ]
    if has_hidden:
        Hc = cfg["classifier_hidden"]
        in_arrays += [packed["e2h_w"], packed["e2h_b"], packed["h2l_w"], packed["h2l_b"]]
        in_specs += [
            pl.BlockSpec((D, Hc), lambda l: (0, 0)),
            pl.BlockSpec((1, Hc), lambda l: (0, 0)),
            pl.BlockSpec((Hc, C), lambda l: (0, 0)),
            pl.BlockSpec((1, C), lambda l: (0, 0)),
        ]
    else:
        in_arrays += [packed["cls_w"], packed["cls_b"]]
        in_specs += [
            pl.BlockSpec((D, C), lambda l: (0, 0)),
            pl.BlockSpec((1, C), lambda l: (0, 0)),
        ]

    logits = pl.pallas_call(
        kernel,
        out_shape=jax.ShapeDtypeStruct((B, C), jnp.float32),
        grid=(L,),                                         # one step per encoder layer
        in_specs=in_specs,
        out_specs=pl.BlockSpec((B, C), lambda l: (0, 0)),
        scratch_shapes=[pltpu.VMEM((BS, D), jnp.float32)], # [B*S, D] activation carry
        compiler_params=pltpu.CompilerParams(
            dimension_semantics=("arbitrary",)),           # layer axis carries state
    )(*in_arrays)
    return logits


# ----------------------------- driver -----------------------------

if __name__ == "__main__":
    key = jax.random.PRNGKey(0)
    pkey, ikey = jax.random.split(key)

    B, S = 2, 8
    params = init_params(pkey, CFG)
    packed = pack_params(params, CFG, batch=B, seq=S)

    input_ids = jax.random.randint(ikey, (B, S), 0, CFG["vocab_size"], dtype=jnp.int32)
    attention_mask = jnp.concatenate(
        [jnp.ones((B, S - 2), jnp.int32), jnp.zeros((B, 2), jnp.int32)], axis=1)

    fwd = jax.jit(functools.partial(sentence_classifier_forward, cfg=CFG))
    logits = fwd(packed, input_ids, attention_mask)
    jax.block_until_ready(logits)

    assert logits.shape == (B, CFG["n_classes"])
    assert logits.dtype == jnp.float32
    assert bool(jnp.all(jnp.isfinite(logits)))
    print("KERNEL_OK")
</pallas_src>

<mosaic_0001>
module attributes {stable_mosaic.version = 11 : i64} {
  func.func @_fused_bert_kernel(%arg0: i32, %arg1: memref<16x1xi32, #tpu.memory_space<vmem>>, %arg2: memref<100x32xf32, #tpu.memory_space<vmem>>, %arg3: memref<16x32xf32, #tpu.memory_space<vmem>>, %arg4: memref<16x16xf32, #tpu.memory_space<vmem>>, %arg5: memref<2x32x96xf32, #tpu.memory_space<vmem>>, %arg6: memref<2x32x32xf32, #tpu.memory_space<vmem>>, %arg7: memref<2x32x64xf32, #tpu.memory_space<vmem>>, %arg8: memref<2x64x32xf32, #tpu.memory_space<vmem>>, %arg9: memref<2x8x96xf32, #tpu.memory_space<vmem>>, %arg10: memref<32x32xf32, #tpu.memory_space<vmem>>, %arg11: memref<3x32xf32, #tpu.memory_space<vmem>>, %arg12: memref<32x2xf32, #tpu.memory_space<vmem>>, %arg13: memref<1x2xf32, #tpu.memory_space<vmem>>, %arg14: memref<2x2xf32, #tpu.memory_space<vmem>>, %arg15: memref<16x32xf32, #tpu.memory_space<vmem>>) attributes {dimension_semantics = [#tpu.dimension_semantics<arbitrary>], iteration_bounds = array<i64: 2>, scalar_prefetch = 0 : i64, scratch_operands = 1 : i64, tpu.core_type = #tpu.core_type<tc>, window_params = [{pipeline_mode = #tpu.pipeline_mode<synchronous>, transform_indices = @transform_0, window_bounds = array<i64: 16, 1>}, {pipeline_mode = #tpu.pipeline_mode<synchronous>, transform_indices = @transform_1, window_bounds = array<i64: 100, 32>}, {pipeline_mode = #tpu.pipeline_mode<synchronous>, transform_indices = @transform_2, window_bounds = array<i64: 16, 32>}, {pipeline_mode = #tpu.pipeline_mode<synchronous>, transform_indices = @transform_3, window_bounds = array<i64: 16, 16>}, {pipeline_mode = #tpu.pipeline_mode<synchronous>, transform_indices = @transform_4, window_bounds = array<i64: 2, 32, 96>}, {pipeline_mode = #tpu.pipeline_mode<synchronous>, transform_indices = @transform_5, window_bounds = array<i64: 2, 32, 32>}, {pipeline_mode = #tpu.pipeline_mode<synchronous>, transform_indices = @transform_6, window_bounds = array<i64: 2, 32, 64>}, {pipeline_mode = #tpu.pipeline_mode<synchronous>, transform_indices = @transform_7, window_bounds = array<i64: 2, 64, 32>}, {pipeline_mode = #tpu.pipeline_mode<synchronous>, transform_indices = @transform_8, window_bounds = array<i64: 2, 8, 96>}, {pipeline_mode = #tpu.pipeline_mode<synchronous>, transform_indices = @transform_9, window_bounds = array<i64: 32, 32>}, {pipeline_mode = #tpu.pipeline_mode<synchronous>, transform_indices = @transform_10, window_bounds = array<i64: 3, 32>}, {pipeline_mode = #tpu.pipeline_mode<synchronous>, transform_indices = @transform_11, window_bounds = array<i64: 32, 2>}, {pipeline_mode = #tpu.pipeline_mode<synchronous>, transform_indices = @transform_12, window_bounds = array<i64: 1, 2>}, {pipeline_mode = #tpu.pipeline_mode<synchronous>, transform_indices = @transform_13, window_bounds = array<i64: 2, 2>}]} {
    %c0_i32 = arith.constant 0 : i32
    %0 = arith.cmpi eq, %arg0, %c0_i32 : i32
    %1 = arith.extui %0 : i1 to i32
    %c0_i32_0 = arith.constant 0 : i32
    %2 = arith.cmpi ne, %1, %c0_i32_0 : i32
    scf.if %2 {
      %c0_45 = arith.constant 0 : index
      %c0_46 = arith.constant 0 : index
      %143 = vector.load %arg1[%c0_45, %c0_46] : memref<16x1xi32, #tpu.memory_space<vmem>>, vector<16x1xi32>
      %144 = tpu.iota {dimensions = array<i32: 1>} : vector<16x100xi32>
      %145 = vector.broadcast %143 : vector<16x1xi32> to vector<16x100xi32>
      %146 = arith.cmpi eq, %144, %145 : vector<16x100xi32>
      %cst_47 = arith.constant 1.000000e+00 : f32
      %cst_48 = arith.constant 0.000000e+00 : f32
      %147 = vector.broadcast %cst_47 : f32 to vector<16x100xf32>
      %148 = vector.broadcast %cst_48 : f32 to vector<16x100xf32>
      %149 = arith.select %146, %147, %148 : vector<16x100xi1>, vector<16x100xf32>
      %c0_49 = arith.constant 0 : index
      %c0_50 = arith.constant 0 : index
      %150 = vector.load %arg2[%c0_49, %c0_50] : memref<100x32xf32, #tpu.memory_space<vmem>>, vector<100x32xf32>
      %cst_51 = arith.constant dense<0.000000e+00> : vector<16x32xf32>
      %151 = tpu.matmul %149, %150, %cst_51 {dimension_numbers = #tpu.dot_dimension_numbers<[1], [0], [0], [1], [0, 0, 1, 1], [], []>} : vector<16x100xf32>, vector<100x32xf32>, vector<16x32xf32> -> vector<16x32xf32>
      %c0_52 = arith.constant 0 : index
      %c0_53 = arith.constant 0 : index
      %152 = vector.load %arg3[%c0_52, %c0_53] : memref<16x32xf32, #tpu.memory_space<vmem>>, vector<16x32xf32>
      %153 = arith.addf %151, %152 : vector<16x32xf32>
      %c0_54 = arith.constant 0 : index
      %c0_55 = arith.constant 0 : index
      %154 = vector.load %arg11[%c0_54, %c0_55] : memref<3x32xf32, #tpu.memory_space<vmem>>, vector<1x32xf32>
      %c1 = arith.constant 1 : index
      %c0_56 = arith.constant 0 : index
      %155 = vector.load %arg11[%c1, %c0_56] : memref<3x32xf32, #tpu.memory_space<vmem>>, vector<1x32xf32>
      %cst_57 = arith.constant dense<0.000000e+00> : vector<16xf32>
      %156 = vector.multi_reduction <add>, %153, %cst_57 [1] : vector<16x32xf32> to vector<16xf32>
      %157 = vector.shape_cast %156 : vector<16xf32> to vector<16x1xf32>
      %cst_58 = arith.constant 3.200000e+01 : f32
      %158 = vector.broadcast %cst_58 : f32 to vector<16x1xf32>
      %159 = arith.divf %157, %158 : vector<16x1xf32>
      %160 = vector.broadcast %159 : vector<16x1xf32> to vector<16x32xf32>
      %161 = arith.subf %153, %160 : vector<16x32xf32>
      %162 = arith.mulf %161, %161 : vector<16x32xf32>
      %cst_59 = arith.constant dense<0.000000e+00> : vector<16xf32>
      %163 = vector.multi_reduction <add>, %162, %cst_59 [1] : vector<16x32xf32> to vector<16xf32>
      %164 = vector.shape_cast %163 : vector<16xf32> to vector<16x1xf32>
      %cst_60 = arith.constant 3.200000e+01 : f32
      %165 = vector.broadcast %cst_60 : f32 to vector<16x1xf32>
      %166 = arith.divf %164, %165 : vector<16x1xf32>
      %167 = vector.broadcast %159 : vector<16x1xf32> to vector<16x32xf32>
      %168 = arith.subf %153, %167 : vector<16x32xf32>
      %cst_61 = arith.constant 9.99999996E-13 : f32
      %169 = vector.broadcast %cst_61 : f32 to vector<16x1xf32>
      %170 = arith.addf %166, %169 : vector<16x1xf32>
      %171 = math.rsqrt %170 : vector<16x1xf32>
      %172 = vector.broadcast %171 : vector<16x1xf32> to vector<16x32xf32>
      %173 = arith.mulf %168, %172 : vector<16x32xf32>
      %174 = vector.broadcast %154 : vector<1x32xf32> to vector<16x32xf32>
      %175 = arith.mulf %173, %174 : vector<16x32xf32>
      %176 = vector.broadcast %155 : vector<1x32xf32> to vector<16x32xf32>
      %177 = arith.addf %175, %176 : vector<16x32xf32>
      %c0_62 = arith.constant 0 : index
      %c0_63 = arith.constant 0 : index
      %178 = vector.load %arg15[%c0_62, %c0_63] : memref<16x32xf32, #tpu.memory_space<vmem>>, vector<16x32xf32>
      tpu.vector_store %arg15[%c0_62, %c0_63], %177 {strides = array<i32>} : memref<16x32xf32, #tpu.memory_space<vmem>>, vector<16x32xf32>,
    } else {
    }
    %c0 = arith.constant 0 : index
    %c0_1 = arith.constant 0 : index
    %3 = vector.load %arg15[%c0, %c0_1] : memref<16x32xf32, #tpu.memory_space<vmem>>, vector<16x32xf32>
    %4 = arith.index_cast %arg0 : i32 to index
    %c0_2 = arith.constant 0 : index
    %c0_3 = arith.constant 0 : index
    %5 = vector.load %arg5[%4, %c0_2, %c0_3] : memref<2x32x96xf32, #tpu.memory_space<vmem>>, vector<1x32x96xf32>
    %6 = vector.shape_cast %5 : vector<1x32x96xf32> to vector<32x96xf32>
    %7 = arith.index_cast %arg0 : i32 to index
    %c0_4 = arith.constant 0 : index
    %c0_5 = arith.constant 0 : index
    %8 = vector.load %arg6[%7, %c0_4, %c0_5] : memref<2x32x32xf32, #tpu.memory_space<vmem>>, vector<1x32x32xf32>
    %9 = vector.shape_cast %8 : vector<1x32x32xf32> to vector<32x32xf32>
    %10 = arith.index_cast %arg0 : i32 to index
    %c0_6 = arith.constant 0 : index
    %c0_7 = arith.constant 0 : index
    %11 = vector.load %arg7[%10, %c0_6, %c0_7] : memref<2x32x64xf32, #tpu.memory_space<vmem>>, vector<1x32x64xf32>
    %12 = vector.shape_cast %11 : vector<1x32x64xf32> to vector<32x64xf32>
    %13 = arith.index_cast %arg0 : i32 to index
    %c0_8 = arith.constant 0 : index
    %c0_9 = arith.constant 0 : index
    %14 = vector.load %arg8[%13, %c0_8, %c0_9] : memref<2x64x32xf32, #tpu.memory_space<vmem>>, vector<1x64x32xf32>
    %15 = vector.shape_cast %14 : vector<1x64x32xf32> to vector<64x32xf32>
    %16 = arith.index_cast %arg0 : i32 to index
    %c0_10 = arith.constant 0 : index
    %c0_11 = arith.constant 0 : index
    %17 = vector.load %arg9[%16, %c0_10, %c0_11] : memref<2x8x96xf32, #tpu.memory_space<vmem>>, vector<1x8x96xf32>
    %18 = vector.shape_cast %17 : vector<1x8x96xf32> to vector<8x96xf32>
    %19 = vector.extract_strided_slice %18 {offsets = [0, 0], sizes = [1, 96], strides = [1, 1]} : vector<8x96xf32> to vector<1x96xf32>
    %20 = vector.extract_strided_slice %18 {offsets = [1, 0], sizes = [1, 32], strides = [1, 1]} : vector<8x96xf32> to vector<1x32xf32>
    %21 = vector.extract_strided_slice %18 {offsets = [2, 0], sizes = [1, 32], strides = [1, 1]} : vector<8x96xf32> to vector<1x32xf32>
    %22 = vector.extract_strided_slice %18 {offsets = [3, 0], sizes = [1, 32], strides = [1, 1]} : vector<8x96xf32> to vector<1x32xf32>
    %23 = vector.extract_strided_slice %18 {offsets = [4, 0], sizes = [1, 64], strides = [1, 1]} : vector<8x96xf32> to vector<1x64xf32>
    %24 = vector.extract_strided_slice %18 {offsets = [5, 0], sizes = [1, 32], strides = [1, 1]} : vector<8x96xf32> to vector<1x32xf32>
    %25 = vector.extract_strided_slice %18 {offsets = [6, 0], sizes = [1, 32], strides = [1, 1]} : vector<8x96xf32> to vector<1x32xf32>
    %26 = vector.extract_strided_slice %18 {offsets = [7, 0], sizes = [1, 32], strides = [1, 1]} : vector<8x96xf32> to vector<1x32xf32>
    %cst = arith.constant dense<0.000000e+00> : vector<16x96xf32>
    %27 = tpu.matmul %3, %6, %cst {dimension_numbers = #tpu.dot_dimension_numbers<[1], [0], [0], [1], [0, 0, 1, 1], [], []>} : vector<16x32xf32>, vector<32x96xf32>, vector<16x96xf32> -> vector<16x96xf32>
    %28 = vector.broadcast %19 : vector<1x96xf32> to vector<16x96xf32>
    %29 = arith.addf %27, %28 : vector<16x96xf32>
    %c0_12 = arith.constant 0 : index
    %c0_13 = arith.constant 0 : index
    %30 = vector.load %arg4[%c0_12, %c0_13] : memref<16x16xf32, #tpu.memory_space<vmem>>, vector<16x16xf32>
    %31 = vector.extract_strided_slice %29 {offsets = [0, 0], sizes = [16, 16], strides = [1, 1]} : vector<16x96xf32> to vector<16x16xf32>
    %32 = vector.extract_strided_slice %29 {offsets = [0, 32], sizes = [16, 16], strides = [1, 1]} : vector<16x96xf32> to vector<16x16xf32>
    %33 = vector.extract_strided_slice %29 {offsets = [0, 64], sizes = [16, 16], strides = [1, 1]} : vector<16x96xf32> to vector<16x16xf32>
    %cst_14 = arith.constant dense<0.000000e+00> : vector<16x16xf32>
    %34 = tpu.matmul %31, %32, %cst_14 {dimension_numbers = #tpu.dot_dimension_numbers<[1], [1], [0], [0], [0, 0, 1, 0], [], []>} : vector<16x16xf32>, vector<16x16xf32>, vector<16x16xf32> -> vector<16x16xf32>
    %cst_15 = arith.constant 2.500000e-01 : f32
    %35 = vector.broadcast %cst_15 : f32 to vector<16x16xf32>
    %36 = arith.mulf %34, %35 : vector<16x16xf32>
    %37 = arith.addf %36, %30 : vector<16x16xf32>
    %cst_16 = arith.constant dense<0xFF800000> : vector<16xf32>
    %38 = vector.multi_reduction <maximumf>, %37, %cst_16 [1] : vector<16x16xf32> to vector<16xf32>
    %39 = vector.shape_cast %38 : vector<16xf32> to vector<16x1xf32>
    %40 = vector.broadcast %39 : vector<16x1xf32> to vector<16x16xf32>
    %41 = arith.subf %37, %40 : vector<16x16xf32>
    %42 = math.exp %41 : vector<16x16xf32>
    %cst_17 = arith.constant dense<0.000000e+00> : vector<16xf32>
    %43 = vector.multi_reduction <add>, %42, %cst_17 [1] : vector<16x16xf32> to vector<16xf32>
    %44 = vector.shape_cast %43 : vector<16xf32> to vector<16x1xf32>
    %45 = tpu.reciprocal %44 {approx = true} : vector<16x1xf32> -> vector<16x1xf32>
    %46 = vector.broadcast %45 : vector<16x1xf32> to vector<16x16xf32>
    %47 = arith.mulf %42, %46 : vector<16x16xf32>
    %cst_18 = arith.constant dense<0.000000e+00> : vector<16x16xf32>
    %48 = tpu.matmul %47, %33, %cst_18 {dimension_numbers = #tpu.dot_dimension_numbers<[1], [0], [0], [1], [0, 0, 1, 1], [], []>} : vector<16x16xf32>, vector<16x16xf32>, vector<16x16xf32> -> vector<16x16xf32>
    %49 = vector.extract_strided_slice %9 {offsets = [0, 0], sizes = [16, 32], strides = [1, 1]} : vector<32x32xf32> to vector<16x32xf32>
    %cst_19 = arith.constant dense<0.000000e+00> : vector<16x32xf32>
    %50 = tpu.matmul %48, %49, %cst_19 {dimension_numbers = #tpu.dot_dimension_numbers<[1], [0], [0], [1], [0, 0, 1, 1], [], []>} : vector<16x16xf32>, vector<16x32xf32>, vector<16x32xf32> -> vector<16x32xf32>
    %51 = vector.extract_strided_slice %29 {offsets = [0, 16], sizes = [16, 16], strides = [1, 1]} : vector<16x96xf32> to vector<16x16xf32>
    %52 = vector.extract_strided_slice %29 {offsets = [0, 48], sizes = [16, 16], strides = [1, 1]} : vector<16x96xf32> to vector<16x16xf32>
    %53 = vector.extract_strided_slice %29 {offsets = [0, 80], sizes = [16, 16], strides = [1, 1]} : vector<16x96xf32> to vector<16x16xf32>
    %cst_20 = arith.constant dense<0.000000e+00> : vector<16x16xf32>
    %54 = tpu.matmul %51, %52, %cst_20 {dimension_numbers = #tpu.dot_dimension_numbers<[1], [1], [0], [0], [0, 0, 1, 0], [], []>} : vector<16x16xf32>, vector<16x16xf32>, vector<16x16xf32> -> vector<16x16xf32>
    %cst_21 = arith.constant 2.500000e-01 : f32
    %55 = vector.broadcast %cst_21 : f32 to vector<16x16xf32>
    %56 = arith.mulf %54, %55 : vector<16x16xf32>
    %57 = arith.addf %56, %30 : vector<16x16xf32>
    %cst_22 = arith.constant dense<0xFF800000> : vector<16xf32>
    %58 = vector.multi_reduction <maximumf>, %57, %cst_22 [1] : vector<16x16xf32> to vector<16xf32>
    %59 = vector.shape_cast %58 : vector<16xf32> to vector<16x1xf32>
    %60 = vector.broadcast %59 : vector<16x1xf32> to vector<16x16xf32>
    %61 = arith.subf %57, %60 : vector<16x16xf32>
    %62 = math.exp %61 : vector<16x16xf32>
    %cst_23 = arith.constant dense<0.000000e+00> : vector<16xf32>
    %63 = vector.multi_reduction <add>, %62, %cst_23 [1] : vector<16x16xf32> to vector<16xf32>
    %64 = vector.shape_cast %63 : vector<16xf32> to vector<16x1xf32>
    %65 = tpu.reciprocal %64 {approx = true} : vector<16x1xf32> -> vector<16x1xf32>
    %66 = vector.broadcast %65 : vector<16x1xf32> to vector<16x16xf32>
    %67 = arith.mulf %62, %66 : vector<16x16xf32>
    %cst_24 = arith.constant dense<0.000000e+00> : vector<16x16xf32>
    %68 = tpu.matmul %67, %53, %cst_24 {dimension_numbers = #tpu.dot_dimension_numbers<[1], [0], [0], [1], [0, 0, 1, 1], [], []>} : vector<16x16xf32>, vector<16x16xf32>, vector<16x16xf32> -> vector<16x16xf32>
    %69 = vector.extract_strided_slice %9 {offsets = [16, 0], sizes = [16, 32], strides = [1, 1]} : vector<32x32xf32> to vector<16x32xf32>
    %cst_25 = arith.constant dense<0.000000e+00> : vector<16x32xf32>
    %70 = tpu.matmul %68, %69, %cst_25 {dimension_numbers = #tpu.dot_dimension_numbers<[1], [0], [0], [1], [0, 0, 1, 1], [], []>} : vector<16x16xf32>, vector<16x32xf32>, vector<16x32xf32> -> vector<16x32xf32>
    %71 = arith.addf %50, %70 : vector<16x32xf32>
    %72 = vector.broadcast %20 : vector<1x32xf32> to vector<16x32xf32>
    %73 = arith.addf %71, %72 : vector<16x32xf32>
    %74 = arith.addf %73, %3 : vector<16x32xf32>
    %cst_26 = arith.constant dense<0.000000e+00> : vector<16xf32>
    %75 = vector.multi_reduction <add>, %74, %cst_26 [1] : vector<16x32xf32> to vector<16xf32>
    %76 = vector.shape_cast %75 : vector<16xf32> to vector<16x1xf32>
    %cst_27 = arith.constant 3.200000e+01 : f32
    %77 = vector.broadcast %cst_27 : f32 to vector<16x1xf32>
    %78 = arith.divf %76, %77 : vector<16x1xf32>
    %79 = vector.broadcast %78 : vector<16x1xf32> to vector<16x32xf32>
    %80 = arith.subf %74, %79 : vector<16x32xf32>
    %81 = arith.mulf %80, %80 : vector<16x32xf32>
    %cst_28 = arith.constant dense<0.000000e+00> : vector<16xf32>
    %82 = vector.multi_reduction <add>, %81, %cst_28 [1] : vector<16x32xf32> to vector<16xf32>
    %83 = vector.shape_cast %82 : vector<16xf32> to vector<16x1xf32>
    %cst_29 = arith.constant 3.200000e+01 : f32
    %84 = vector.broadcast %cst_29 : f32 to vector<16x1xf32>
    %85 = arith.divf %83, %84 : vector<16x1xf32>
    %86 = vector.broadcast %78 : vector<16x1xf32> to vector<16x32xf32>
    %87 = arith.subf %74, %86 : vector<16x32xf32>
    %cst_30 = arith.constant 9.99999996E-13 : f32
    %88 = vector.broadcast %cst_30 : f32 to vector<16x1xf32>
    %89 = arith.addf %85, %88 : vector<16x1xf32>
    %90 = math.rsqrt %89 : vector<16x1xf32>
    %91 = vector.broadcast %90 : vector<16x1xf32> to vector<16x32xf32>
    %92 = arith.mulf %87, %91 : vector<16x32xf32>
    %93 = vector.broadcast %21 : vector<1x32xf32> to vector<16x32xf32>
    %94 = arith.mulf %92, %93 : vector<16x32xf32>
    %95 = vector.broadcast %22 : vector<1x32xf32> to vector<16x32xf32>
    %96 = arith.addf %94, %95 : vector<16x32xf32>
    %cst_31 = arith.constant dense<0.000000e+00> : vector<16x64xf32>
    %97 = tpu.matmul %96, %12, %cst_31 {dimension_numbers = #tpu.dot_dimension_numbers<[1], [0], [0], [1], [0, 0, 1, 1], [], []>} : vector<16x32xf32>, vector<32x64xf32>, vector<16x64xf32> -> vector<16x64xf32>
    %98 = vector.broadcast %23 : vector<1x64xf32> to vector<16x64xf32>
    %99 = arith.addf %97, %98 : vector<16x64xf32>
    %cst_32 = arith.constant 5.000000e-01 : f32
    %100 = vector.broadcast %cst_32 : f32 to vector<16x64xf32>
    %101 = arith.mulf %100, %99 : vector<16x64xf32>
    %cst_33 = arith.constant 4.471500e-02 : f32
    %102 = vector.broadcast %cst_33 : f32 to vector<16x64xf32>
    %103 = arith.mulf %102, %99 : vector<16x64xf32>
    %104 = arith.mulf %103, %99 : vector<16x64xf32>
    %105 = arith.mulf %104, %99 : vector<16x64xf32>
    %106 = arith.addf %99, %105 : vector<16x64xf32>
    %cst_34 = arith.constant 0.797884583 : f32
    %107 = vector.broadcast %cst_34 : f32 to vector<16x64xf32>
    %108 = arith.mulf %107, %106 : vector<16x64xf32>
    %109 = math.tanh %108 : vector<16x64xf32>
    %cst_35 = arith.constant 1.000000e+00 : f32
    %110 = vector.broadcast %cst_35 : f32 to vector<16x64xf32>
    %111 = arith.addf %110, %109 : vector<16x64xf32>
    %112 = arith.mulf %101, %111 : vector<16x64xf32>
    %cst_36 = arith.constant dense<0.000000e+00> : vector<16x32xf32>
    %113 = tpu.matmul %112, %15, %cst_36 {dimension_numbers = #tpu.dot_dimension_numbers<[1], [0], [0], [1], [0, 0, 1, 1], [], []>} : vector<16x64xf32>, vector<64x32xf32>, vector<16x32xf32> -> vector<16x32xf32>
    %114 = vector.broadcast %24 : vector<1x32xf32> to vector<16x32xf32>
    %115 = arith.addf %113, %114 : vector<16x32xf32>
    %116 = arith.addf %115, %96 : vector<16x32xf32>
    %cst_37 = arith.constant dense<0.000000e+00> : vector<16xf32>
    %117 = vector.multi_reduction <add>, %116, %cst_37 [1] : vector<16x32xf32> to vector<16xf32>
    %118 = vector.shape_cast %117 : vector<16xf32> to vector<16x1xf32>
    %cst_38 = arith.constant 3.200000e+01 : f32
    %119 = vector.broadcast %cst_38 : f32 to vector<16x1xf32>
    %120 = arith.divf %118, %119 : vector<16x1xf32>
    %121 = vector.broadcast %120 : vector<16x1xf32> to vector<16x32xf32>
    %122 = arith.subf %116, %121 : vector<16x32xf32>
    %123 = arith.mulf %122, %122 : vector<16x32xf32>
    %cst_39 = arith.constant dense<0.000000e+00> : vector<16xf32>
    %124 = vector.multi_reduction <add>, %123, %cst_39 [1] : vector<16x32xf32> to vector<16xf32>
    %125 = vector.shape_cast %124 : vector<16xf32> to vector<16x1xf32>
    %cst_40 = arith.constant 3.200000e+01 : f32
    %126 = vector.broadcast %cst_40 : f32 to vector<16x1xf32>
    %127 = arith.divf %125, %126 : vector<16x1xf32>
    %128 = vector.broadcast %120 : vector<16x1xf32> to vector<16x32xf32>
    %129 = arith.subf %116, %128 : vector<16x32xf32>
    %cst_41 = arith.constant 9.99999996E-13 : f32
    %130 = vector.broadcast %cst_41 : f32 to vector<16x1xf32>
    %131 = arith.addf %127, %130 : vector<16x1xf32>
    %132 = math.rsqrt %131 : vector<16x1xf32>
    %133 = vector.broadcast %132 : vector<16x1xf32> to vector<16x32xf32>
    %134 = arith.mulf %129, %133 : vector<16x32xf32>
    %135 = vector.broadcast %25 : vector<1x32xf32> to vector<16x32xf32>
    %136 = arith.mulf %134, %135 : vector<16x32xf32>
    %137 = vector.broadcast %26 : vector<1x32xf32> to vector<16x32xf32>
    %138 = arith.addf %136, %137 : vector<16x32xf32>
    %c0_42 = arith.constant 0 : index
    %c0_43 = arith.constant 0 : index
    %139 = vector.load %arg15[%c0_42, %c0_43] : memref<16x32xf32, #tpu.memory_space<vmem>>, vector<16x32xf32>
    tpu.vector_store %arg15[%c0_42, %c0_43], %138 {strides = array<i32>} : memref<16x32xf32, #tpu.memory_space<vmem>>, vector<16x32xf32>,
    %c1_i32 = arith.constant 1 : i32
    %140 = arith.cmpi eq, %arg0, %c1_i32 : i32
    %141 = arith.extui %140 : i1 to i32
    %c0_i32_44 = arith.constant 0 : i32
    %142 = arith.cmpi ne, %141, %c0_i32_44 : i32
    scf.if %142 {
      %143 = vector.extract_strided_slice %138 {offsets = [0, 0], sizes = [1, 32], strides = [1, 1]} : vector<16x32xf32> to vector<1x32xf32>
      %144 = vector.extract_strided_slice %138 {offsets = [8, 0], sizes = [1, 32], strides = [1, 1]} : vector<16x32xf32> to vector<1x32xf32>
      %145 = tpu.concatenate %143, %144 in 0 : vector<1x32xf32>, vector<1x32xf32> -> vector<2x32xf32>
      %c0_45 = arith.constant 0 : index
      %c0_46 = arith.constant 0 : index
      %146 = vector.load %arg10[%c0_45, %c0_46] : memref<32x32xf32, #tpu.memory_space<vmem>>, vector<32x32xf32>
      %cst_47 = arith.constant dense<0.000000e+00> : vector<2x32xf32>
      %147 = tpu.matmul %145, %146, %cst_47 {dimension_numbers = #tpu.dot_dimension_numbers<[1], [0], [0], [1], [0, 0, 1, 1], [], []>} : vector<2x32xf32>, vector<32x32xf32>, vector<2x32xf32> -> vector<2x32xf32>
      %c2 = arith.constant 2 : index
      %c0_48 = arith.constant 0 : index
      %148 = vector.load %arg11[%c2, %c0_48] : memref<3x32xf32, #tpu.memory_space<vmem>>, vector<1x32xf32>
      %149 = vector.broadcast %148 : vector<1x32xf32> to vector<2x32xf32>
      %150 = arith.addf %147, %149 : vector<2x32xf32>
      %151 = math.tanh %150 : vector<2x32xf32>
      %c0_49 = arith.constant 0 : index
      %c0_50 = arith.constant 0 : index
      %152 = vector.load %arg12[%c0_49, %c0_50] : memref<32x2xf32, #tpu.memory_space<vmem>>, vector<32x2xf32>
      %cst_51 = arith.constant dense<0.000000e+00> : vector<2x2xf32>
      %153 = tpu.matmul %151, %152, %cst_51 {dimension_numbers = #tpu.dot_dimension_numbers<[1], [0], [0], [1], [0, 0, 1, 1], [], []>} : vector<2x32xf32>, vector<32x2xf32>, vector<2x2xf32> -> vector<2x2xf32>
      %c0_52 = arith.constant 0 : index
      %c0_53 = arith.constant 0 : index
      %154 = vector.load %arg13[%c0_52, %c0_53] : memref<1x2xf32, #tpu.memory_space<vmem>>, vector<1x2xf32>
      %155 = vector.broadcast %154 : vector<1x2xf32> to vector<2x2xf32>
      %156 = arith.addf %153, %155 : vector<2x2xf32>
      %c0_54 = arith.constant 0 : index
      %c0_55 = arith.constant 0 : index
      %157 = vector.load %arg14[%c0_54, %c0_55] : memref<2x2xf32, #tpu.memory_space<vmem>>, vector<2x2xf32>
      tpu.vector_store %arg14[%c0_54, %c0_55], %156 {strides = array<i32>} : memref<2x2xf32, #tpu.memory_space<vmem>>, vector<2x2xf32>,
    } else {
    }
    return
  }
  func.func @transform_0(%arg0: i32) -> (i32, i32) {
    %c0_i32 = arith.constant 0 : i32
    %c0_i32_0 = arith.constant 0 : i32
    %c0_i32_1 = arith.constant 0 : i32
    return %c0_i32, %c0_i32_0 : i32, i32
  }
  func.func @transform_1(%arg0: i32) -> (i32, i32) {
    %c0_i32 = arith.constant 0 : i32
    %c0_i32_0 = arith.constant 0 : i32
    %c0_i32_1 = arith.constant 0 : i32
    return %c0_i32, %c0_i32_0 : i32, i32
  }
  func.func @transform_2(%arg0: i32) -> (i32, i32) {
    %c0_i32 = arith.constant 0 : i32
    %c0_i32_0 = arith.constant 0 : i32
    %c0_i32_1 = arith.constant 0 : i32
    return %c0_i32, %c0_i32_0 : i32, i32
  }
  func.func @transform_3(%arg0: i32) -> (i32, i32) {
    %c0_i32 = arith.constant 0 : i32
    %c0_i32_0 = arith.constant 0 : i32
    %c0_i32_1 = arith.constant 0 : i32
    return %c0_i32, %c0_i32_0 : i32, i32
  }
  func.func @transform_4(%arg0: i32) -> (i32, i32, i32) {
    %c0_i32 = arith.constant 0 : i32
    %c0_i32_0 = arith.constant 0 : i32
    %c0_i32_1 = arith.constant 0 : i32
    %c0_i32_2 = arith.constant 0 : i32
    return %c0_i32, %c0_i32_0, %c0_i32_1 : i32, i32, i32
  }
  func.func @transform_5(%arg0: i32) -> (i32, i32, i32) {
    %c0_i32 = arith.constant 0 : i32
    %c0_i32_0 = arith.constant 0 : i32
    %c0_i32_1 = arith.constant 0 : i32
    %c0_i32_2 = arith.constant 0 : i32
    return %c0_i32, %c0_i32_0, %c0_i32_1 : i32, i32, i32
  }
  func.func @transform_6(%arg0: i32) -> (i32, i32, i32) {
    %c0_i32 = arith.constant 0 : i32
    %c0_i32_0 = arith.constant 0 : i32
    %c0_i32_1 = arith.constant 0 : i32
    %c0_i32_2 = arith.constant 0 : i32
    return %c0_i32, %c0_i32_0, %c0_i32_1 : i32, i32, i32
  }
  func.func @transform_7(%arg0: i32) -> (i32, i32, i32) {
    %c0_i32 = arith.constant 0 : i32
    %c0_i32_0 = arith.constant 0 : i32
    %c0_i32_1 = arith.constant 0 : i32
    %c0_i32_2 = arith.constant 0 : i32
    return %c0_i32, %c0_i32_0, %c0_i32_1 : i32, i32, i32
  }
  func.func @transform_8(%arg0: i32) -> (i32, i32, i32) {
    %c0_i32 = arith.constant 0 : i32
    %c0_i32_0 = arith.constant 0 : i32
    %c0_i32_1 = arith.constant 0 : i32
    %c0_i32_2 = arith.constant 0 : i32
    return %c0_i32, %c0_i32_0, %c0_i32_1 : i32, i32, i32
  }
  func.func @transform_9(%arg0: i32) -> (i32, i32) {
    %c0_i32 = arith.constant 0 : i32
    %c0_i32_0 = arith.constant 0 : i32
    %c0_i32_1 = arith.constant 0 : i32
    return %c0_i32, %c0_i32_0 : i32, i32
  }
  func.func @transform_10(%arg0: i32) -> (i32, i32) {
    %c0_i32 = arith.constant 0 : i32
    %c0_i32_0 = arith.constant 0 : i32
    %c0_i32_1 = arith.constant 0 : i32
    return %c0_i32, %c0_i32_0 : i32, i32
  }
  func.func @transform_11(%arg0: i32) -> (i32, i32) {
    %c0_i32 = arith.constant 0 : i32
    %c0_i32_0 = arith.constant 0 : i32
    %c0_i32_1 = arith.constant 0 : i32
    return %c0_i32, %c0_i32_0 : i32, i32
  }
  func.func @transform_12(%arg0: i32) -> (i32, i32) {
    %c0_i32 = arith.constant 0 : i32
    %c0_i32_0 = arith.constant 0 : i32
    %c0_i32_1 = arith.constant 0 : i32
    return %c0_i32, %c0_i32_0 : i32, i32
  }
  func.func @transform_13(%arg0: i32) -> (i32, i32) {
    %c0_i32 = arith.constant 0 : i32
    %c0_i32_0 = arith.constant 0 : i32
    %c0_i32_1 = arith.constant 0 : i32
    return %c0_i32, %c0_i32_0 : i32, i32
  }
}

</mosaic_0001>

<llo_original>
// kernel: sentence_classifier_forward.1
$region0: #{sentence_classifier_forward.1}
  #allocation0 [shape = 'u32[]', space=smem, size = 0x4, offset = 0x4, fixed_abs, tag = 'smem constant byte address 0x4 - core index']
  #allocation1 [shape = 'u32[144,128]{1,0:T(1,128)}', space=vmem, size = 0x12000, scoped, tag = 'internal scratch']
  #allocation2 [shape = 'f32[16,32]{1,0:T(8,128)}', space=vmem, size = 0x2000, scoped, tag = 'scratch operand']
  %s0 = inlined_call_operand.vmem [shape: s32[16,1], index: 0, kind: input, shape index: {}]
  %s1 = inlined_call_operand.vmem [shape: f32[100,32], index: 1, kind: input, shape index: {}]
  %s2 = inlined_call_operand.vmem [shape: f32[16,32], index: 2, kind: input, shape index: {}]
  %s3 = inlined_call_operand.vmem [shape: f32[16,16], index: 3, kind: input, shape index: {}]
  %s4 = inlined_call_operand.vmem [shape: f32[2,32,96], index: 4, kind: input, shape index: {}]
  %s5 = inlined_call_operand.vmem [shape: f32[2,32,32], index: 5, kind: input, shape index: {}]
  %s6 = inlined_call_operand.vmem [shape: f32[2,32,64], index: 6, kind: input, shape index: {}]
  %s7 = inlined_call_operand.vmem [shape: f32[2,64,32], index: 7, kind: input, shape index: {}]
  %s8 = inlined_call_operand.vmem [shape: f32[2,8,96], index: 8, kind: input, shape index: {}]
  %s9 = inlined_call_operand.vmem [shape: f32[32,32], index: 9, kind: input, shape index: {}]
  %s10 = inlined_call_operand.vmem [shape: f32[3,32], index: 10, kind: input, shape index: {}]
  %s11 = inlined_call_operand.vmem [shape: f32[32,2], index: 11, kind: input, shape index: {}]
  %s12 = inlined_call_operand.vmem [shape: f32[1,2], index: 12, kind: input, shape index: {}]
  %s13 = inlined_call_operand.hbm [shape: f32[2,2], index: 13, kind: output, shape index: {}]
  %s14 = sld [smem:[#allocation0]]
  $region93: #{sentence_classifier_forward.1} parent=0
    _
  %s16 = ssub.s32 1, %s14
  %s17 = scalar_select 0, %s16, %s14
  $region1: #{sentence_classifier_forward.1} parent=0
    #allocation3 [shape = 'u8[1024]{0}', space=vmem, size = 0x400, scoped, tag = 'output window, operand 0, single buffered']
    #allocation4 [shape = 's32[2]{0}', space=sflag, size = 0x8, scoped, tag = 'scoped memory for sentence_classifier_forward.1']
    %18 = vsyncpa [#allocation4], 0
    loop: start=0, step=1, limit=4
    $region2: #{sentence_classifier_forward.1} parent=1 // loop_pre_header
      _
    $region3: #{sentence_classifier_forward.1} parent=1 // loop_header
      %s20 = sphi 0, %s24
      %p21 = scmp.ge.s32.totalorder %s20, 4
      %s28 = sphi 0, %s28
      %s30 = sphi 0, %s28
      %s31 = sphi 0, %s30
      %s45 = sphi 0, %s31
      %s49 = sphi 0, %s49
      %s51 = sphi 0, %s49
      %s52 = sphi 0, %s51
      %s66 = sphi 0, %s52
      %s70 = sphi 0, %s70
      %s72 = sphi 0, %s70
      %s73 = sphi 0, %s72
      %s87 = sphi 0, %s73
      %s91 = sphi 0, %s91
      %s93 = sphi 0, %s91
      %s94 = sphi 0, %s93
      %s108 = sphi 0, %s94
      %s112 = sphi 0, %s112
      %s114 = sphi 0, %s112
      %s115 = sphi 0, %s114
      %s129 = sphi 0, %s115
      %s133 = sphi 0, %s133
      %s135 = sphi 0, %s133
      %s136 = sphi 0, %s135
      %s150 = sphi 0, %s136
      %s154 = sphi 0, %s154
      %s156 = sphi 0, %s154
      %s157 = sphi 0, %s156
      %s171 = sphi 0, %s157
      %s175 = sphi 0, %s175
      %s177 = sphi 0, %s175
      %s178 = sphi 0, %s177
      %s192 = sphi 0, %s178
      %s196 = sphi 0, %s196
      %s198 = sphi 0, %s196
      %s199 = sphi 0, %s198
      %s213 = sphi 0, %s199
      %s217 = sphi 0, %s217
      %s219 = sphi 0, %s217
      %s220 = sphi 0, %s219
      %s234 = sphi 0, %s220
      %s238 = sphi 0, %s238
      %s240 = sphi 0, %s238
      %s241 = sphi 0, %s240
      %s255 = sphi 0, %s241
      %s259 = sphi 0, %s259
      %s261 = sphi 0, %s259
      %s262 = sphi 0, %s261
      %s276 = sphi 0, %s262
      %s280 = sphi 0, %s280
      %s282 = sphi 0, %s280
      %s283 = sphi 0, %s282
      %s297 = sphi 0, %s283
      %s301 = sphi 0, %s301
      %s303 = sphi 0, %s301
      %s304 = sphi 0, %s303
      %s318 = sphi 0, %s304
    $region4: #{sentence_classifier_forward.1} parent=1 // loop_header_branch
      %23 = sbr.rel (%p21) target = $region8
    $region5: #{sentence_classifier_forward.1} parent=1 // loop_body
      %s25 = ssub.s32 %s20, 1
      %s26 = ssub.s32 %s20, 2
      %s27 = sadd.s32 %s20, 1
      %s29 = sadd.s32 %s28, 1
      %p32 = scmp.eq.s32.totalorder %s20, 1
      %p33 = scmp.ne.s32.totalorder %s28, %s30
      %p34 = scmp.eq.s32.totalorder %s20, 0
      %p35 = por %p33, %p34
      %p36 = scmp.ne.s32.totalorder %s28, %s30
      %p37 = scmp.eq.s32.totalorder %s25, 1
      %p38 = por %p36, %p37
      %p39 = scmp.ne.s32.totalorder %s30, %s31
      %p40 = scmp.eq.s32.totalorder %s25, 0
      %p41 = por %p39, %p40
      %p42 = scmp.ne.s32.totalorder %s30, %s31
      %p43 = scmp.eq.s32.totalorder %s26, 1
      %p44 = por %p42, %p43
      %p46 = scmp.ne.s32.totalorder %s31, %s45
      %p47 = scmp.eq.s32.totalorder %s26, 0
      %p48 = por %p46, %p47
      %s50 = sadd.s32 %s49, 1
      %p53 = scmp.eq.s32.totalorder %s20, 1
      %p54 = scmp.ne.s32.totalorder %s49, %s51
      %p55 = scmp.eq.s32.totalorder %s20, 0
      %p56 = por %p54, %p55
      %p57 = scmp.ne.s32.totalorder %s49, %s51
      %p58 = scmp.eq.s32.totalorder %s25, 1
      %p59 = por %p57, %p58
      %p60 = scmp.ne.s32.totalorder %s51, %s52
      %p61 = scmp.eq.s32.totalorder %s25, 0
      %p62 = por %p60, %p61
      %p63 = scmp.ne.s32.totalorder %s51, %s52
      %p64 = scmp.eq.s32.totalorder %s26, 1
      %p65 = por %p63, %p64
      %p67 = scmp.ne.s32.totalorder %s52, %s66
      %p68 = scmp.eq.s32.totalorder %s26, 0
      %p69 = por %p67, %p68
      %s71 = sadd.s32 %s70, 1
      %p74 = scmp.eq.s32.totalorder %s20, 1
      %p75 = scmp.ne.s32.totalorder %s70, %s72
      %p76 = scmp.eq.s32.totalorder %s20, 0
      %p77 = por %p75, %p76
      %p78 = scmp.ne.s32.totalorder %s70, %s72
      %p79 = scmp.eq.s32.totalorder %s25, 1
      %p80 = por %p78, %p79
      %p81 = scmp.ne.s32.totalorder %s72, %s73
      %p82 = scmp.eq.s32.totalorder %s25, 0
      %p83 = por %p81, %p82
      %p84 = scmp.ne.s32.totalorder %s72, %s73
      %p85 = scmp.eq.s32.totalorder %s26, 1
      %p86 = por %p84, %p85
      %p88 = scmp.ne.s32.totalorder %s73, %s87
      %p89 = scmp.eq.s32.totalorder %s26, 0
      %p90 = por %p88, %p89
      %s92 = sadd.s32 %s91, 1
      %p95 = scmp.eq.s32.totalorder %s20, 1
      %p96 = scmp.ne.s32.totalorder %s91, %s93
      %p97 = scmp.eq.s32.totalorder %s20, 0
      %p98 = por %p96, %p97
      %p99 = scmp.ne.s32.totalorder %s91, %s93
      %p100 = scmp.eq.s32.totalorder %s25, 1
      %p101 = por %p99, %p100
      %p102 = scmp.ne.s32.totalorder %s93, %s94
      %p103 = scmp.eq.s32.totalorder %s25, 0
      %p104 = por %p102, %p103
      %p105 = scmp.ne.s32.totalorder %s93, %s94
      %p106 = scmp.eq.s32.totalorder %s26, 1
      %p107 = por %p105, %p106
      %p109 = scmp.ne.s32.totalorder %s94, %s108
      %p110 = scmp.eq.s32.totalorder %s26, 0
      %p111 = por %p109, %p110
      %s113 = sadd.s32 %s112, 1
      %p116 = scmp.eq.s32.totalorder %s20, 1
      %p117 = scmp.ne.s32.totalorder %s112, %s114
      %p118 = scmp.eq.s32.totalorder %s20, 0
      %p119 = por %p117, %p118
      %p120 = scmp.ne.s32.totalorder %s112, %s114
      %p121 = scmp.eq.s32.totalorder %s25, 1
      %p122 = por %p120, %p121
      %p123 = scmp.ne.s32.totalorder %s114, %s115
      %p124 = scmp.eq.s32.totalorder %s25, 0
      %p125 = por %p123, %p124
      %p126 = scmp.ne.s32.totalorder %s114, %s115
      %p127 = scmp.eq.s32.totalorder %s26, 1
      %p128 = por %p126, %p127
      %p130 = scmp.ne.s32.totalorder %s115, %s129
      %p131 = scmp.eq.s32.totalorder %s26, 0
      %p132 = por %p130, %p131
      %s134 = sadd.s32 %s133, 1
      %p137 = scmp.eq.s32.totalorder %s20, 1
      %p138 = scmp.ne.s32.totalorder %s133, %s135
      %p139 = scmp.eq.s32.totalorder %s20, 0
      %p140 = por %p138, %p139
      %p141 = scmp.ne.s32.totalorder %s133, %s135
      %p142 = scmp.eq.s32.totalorder %s25, 1
      %p143 = por %p141, %p142
      %p144 = scmp.ne.s32.totalorder %s135, %s136
      %p145 = scmp.eq.s32.totalorder %s25, 0
      %p146 = por %p144, %p145
      %p147 = scmp.ne.s32.totalorder %s135, %s136
      %p148 = scmp.eq.s32.totalorder %s26, 1
      %p149 = por %p147, %p148
      %p151 = scmp.ne.s32.totalorder %s136, %s150
      %p152 = scmp.eq.s32.totalorder %s26, 0
      %p153 = por %p151, %p152
      %s155 = sadd.s32 %s154, 1
      %p158 = scmp.eq.s32.totalorder %s20, 1
      %p159 = scmp.ne.s32.totalorder %s154, %s156
      %p160 = scmp.eq.s32.totalorder %s20, 0
      %p161 = por %p159, %p160
      %p162 = scmp.ne.s32.totalorder %s154, %s156
      %p163 = scmp.eq.s32.totalorder %s25, 1
      %p164 = por %p162, %p163
      %p165 = scmp.ne.s32.totalorder %s156, %s157
      %p166 = scmp.eq.s32.totalorder %s25, 0
      %p167 = por %p165, %p166
      %p168 = scmp.ne.s32.totalorder %s156, %s157
      %p169 = scmp.eq.s32.totalorder %s26, 1
      %p170 = por %p168, %p169
      %p172 = scmp.ne.s32.totalorder %s157, %s171
      %p173 = scmp.eq.s32.totalorder %s26, 0
      %p174 = por %p172, %p173
      %s176 = sadd.s32 %s175, 1
      %p179 = scmp.eq.s32.totalorder %s20, 1
      %p180 = scmp.ne.s32.totalorder %s175, %s177
      %p181 = scmp.eq.s32.totalorder %s20, 0
      %p182 = por %p180, %p181
      %p183 = scmp.ne.s32.totalorder %s175, %s177
      %p184 = scmp.eq.s32.totalorder %s25, 1
      %p185 = por %p183, %p184
      %p186 = scmp.ne.s32.totalorder %s177, %s178
      %p187 = scmp.eq.s32.totalorder %s25, 0
      %p188 = por %p186, %p187
      %p189 = scmp.ne.s32.totalorder %s177, %s178
      %p190 = scmp.eq.s32.totalorder %s26, 1
      %p191 = por %p189, %p190
      %p193 = scmp.ne.s32.totalorder %s178, %s192
      %p194 = scmp.eq.s32.totalorder %s26, 0
      %p195 = por %p193, %p194
      %s197 = sadd.s32 %s196, 1
      %p200 = scmp.eq.s32.totalorder %s20, 1
      %p201 = scmp.ne.s32.totalorder %s196, %s198
      %p202 = scmp.eq.s32.totalorder %s20, 0
      %p203 = por %p201, %p202
      %p204 = scmp.ne.s32.totalorder %s196, %s198
      %p205 = scmp.eq.s32.totalorder %s25, 1
      %p206 = por %p204, %p205
      %p207 = scmp.ne.s32.totalorder %s198, %s199
      %p208 = scmp.eq.s32.totalorder %s25, 0
      %p209 = por %p207, %p208
      %p210 = scmp.ne.s32.totalorder %s198, %s199
      %p211 = scmp.eq.s32.totalorder %s26, 1
      %p212 = por %p210, %p211
      %p214 = scmp.ne.s32.totalorder %s199, %s213
      %p215 = scmp.eq.s32.totalorder %s26, 0
      %p216 = por %p214, %p215
      %s218 = sadd.s32 %s217, 1
      %p221 = scmp.eq.s32.totalorder %s20, 1
      %p222 = scmp.ne.s32.totalorder %s217, %s219
      %p223 = scmp.eq.s32.totalorder %s20, 0
      %p224 = por %p222, %p223
      %p225 = scmp.ne.s32.totalorder %s217, %s219
      %p226 = scmp.eq.s32.totalorder %s25, 1
      %p227 = por %p225, %p226
      %p228 = scmp.ne.s32.totalorder %s219, %s220
      %p229 = scmp.eq.s32.totalorder %s25, 0
      %p230 = por %p228, %p229
      %p231 = scmp.ne.s32.totalorder %s219, %s220
      %p232 = scmp.eq.s32.totalorder %s26, 1
      %p233 = por %p231, %p232
      %p235 = scmp.ne.s32.totalorder %s220, %s234
      %p236 = scmp.eq.s32.totalorder %s26, 0
      %p237 = por %p235, %p236
      %s239 = sadd.s32 %s238, 1
      %p242 = scmp.eq.s32.totalorder %s20, 1
      %p243 = scmp.ne.s32.totalorder %s238, %s240
      %p244 = scmp.eq.s32.totalorder %s20, 0
      %p245 = por %p243, %p244
      %p246 = scmp.ne.s32.totalorder %s238, %s240
      %p247 = scmp.eq.s32.totalorder %s25, 1
      %p248 = por %p246, %p247
      %p249 = scmp.ne.s32.totalorder %s240, %s241
      %p250 = scmp.eq.s32.totalorder %s25, 0
      %p251 = por %p249, %p250
      %p252 = scmp.ne.s32.totalorder %s240, %s241
      %p253 = scmp.eq.s32.totalorder %s26, 1
      %p254 = por %p252, %p253
      %p256 = scmp.ne.s32.totalorder %s241, %s255
      %p257 = scmp.eq.s32.totalorder %s26, 0
      %p258 = por %p256, %p257
      %s260 = sadd.s32 %s259, 1
      %p263 = scmp.eq.s32.totalorder %s20, 1
      %p264 = scmp.ne.s32.totalorder %s259, %s261
      %p265 = scmp.eq.s32.totalorder %s20, 0
      %p266 = por %p264, %p265
      %p267 = scmp.ne.s32.totalorder %s259, %s261
      %p268 = scmp.eq.s32.totalorder %s25, 1
      %p269 = por %p267, %p268
      %p270 = scmp.ne.s32.totalorder %s261, %s262
      %p271 = scmp.eq.s32.totalorder %s25, 0
      %p272 = por %p270, %p271
      %p273 = scmp.ne.s32.totalorder %s261, %s262
      %p274 = scmp.eq.s32.totalorder %s26, 1
      %p275 = por %p273, %p274
      %p277 = scmp.ne.s32.totalorder %s262, %s276
      %p278 = scmp.eq.s32.totalorder %s26, 0
      %p279 = por %p277, %p278
      %s281 = sadd.s32 %s280, 1
      %p284 = scmp.eq.s32.totalorder %s20, 1
      %p285 = scmp.ne.s32.totalorder %s280, %s282
      %p286 = scmp.eq.s32.totalorder %s20, 0
      %p287 = por %p285, %p286
      %p288 = scmp.ne.s32.totalorder %s280, %s282
      %p289 = scmp.eq.s32.totalorder %s25, 1
      %p290 = por %p288, %p289
      %p291 = scmp.ne.s32.totalorder %s282, %s283
      %p292 = scmp.eq.s32.totalorder %s25, 0
      %p293 = por %p291, %p292
      %p294 = scmp.ne.s32.totalorder %s282, %s283
      %p295 = scmp.eq.s32.totalorder %s26, 1
      %p296 = por %p294, %p295
      %p298 = scmp.ne.s32.totalorder %s283, %s297
      %p299 = scmp.eq.s32.totalorder %s26, 0
      %p300 = por %p298, %p299
      %s302 = sadd.s32 %s301, 1
      %p305 = scmp.eq.s32.totalorder %s20, 1
      %p306 = scmp.ne.s32.totalorder %s301, %s303
      %p307 = scmp.eq.s32.totalorder %s20, 0
      %p308 = por %p306, %p307
      %p309 = scmp.ne.s32.totalorder %s301, %s303
      %p310 = scmp.eq.s32.totalorder %s25, 1
      %p311 = por %p309, %p310
      %p312 = scmp.ne.s32.totalorder %s303, %s304
      %p313 = scmp.eq.s32.totalorder %s25, 0
      %p314 = por %p312, %p313
      %p315 = scmp.ne.s32.totalorder %s303, %s304
      %p316 = scmp.eq.s32.totalorder %s26, 1
      %p317 = por %p315, %p316
      %p319 = scmp.ne.s32.totalorder %s304, %s318
      %p320 = scmp.eq.s32.totalorder %s26, 0
      %p321 = por %p319, %p320
      %p322 = scmp.le.s32.totalorder 1, %s20
      %p323 = scmp.lt.s32.totalorder %s20, 3
      %p324 = pnand %p322, %p323
      %p325 = pneg %p324
      // Predicated region
      $region9: #{sentence_classifier_forward.1} parent=5 // pred_check
        _
      $region10: #{sentence_classifier_forward.1} parent=5 // pred_check_branch
        %327 = sbr.rel (%p324) target = $region12
      $region11: #{sentence_classifier_forward.1} parent=5 // pred_region
        %s328 = ssub.s32 %s20, 1
        // Predicated region
        $region13: #{sentence_classifier_forward.1} parent=11 // pred_check
          %p329 = pneg %p41
        $region14: #{sentence_classifier_forward.1} parent=11 // pred_check_branch
          %331 = sbr.rel (%p329) target = $region16
        $region15: #{sentence_classifier_forward.1} parent=11 // pred_region
          _
        $region16: #{sentence_classifier_forward.1} parent=11 // pred_fallthru
          _
        // Predicated region
        $region17: #{sentence_classifier_forward.1} parent=11 // pred_check
          %p332 = pneg %p62
        $region18: #{sentence_classifier_forward.1} parent=11 // pred_check_branch
          %334 = sbr.rel (%p332) target = $region20
        $region19: #{sentence_classifier_forward.1} parent=11 // pred_region
          _
        $region20: #{sentence_classifier_forward.1} parent=11 // pred_fallthru
          _
        // Predicated region
        $region21: #{sentence_classifier_forward.1} parent=11 // pred_check
          %p335 = pneg %p83
        $region22: #{sentence_classifier_forward.1} parent=11 // pred_check_branch
          %337 = sbr.rel (%p335) target = $region24
        $region23: #{sentence_classifier_forward.1} parent=11 // pred_region
          _
        $region24: #{sentence_classifier_forward.1} parent=11 // pred_fallthru
          _
        // Predicated region
        $region25: #{sentence_classifier_forward.1} parent=11 // pred_check
          %p338 = pneg %p104
        $region26: #{sentence_classifier_forward.1} parent=11 // pred_check_branch
          %340 = sbr.rel (%p338) target = $region28
        $region27: #{sentence_classifier_forward.1} parent=11 // pred_region
          _
        $region28: #{sentence_classifier_forward.1} parent=11 // pred_fallthru
          _
        // Predicated region
        $region29: #{sentence_classifier_forward.1} parent=11 // pred_check
          %p341 = pneg %p125
        $region30: #{sentence_classifier_forward.1} parent=11 // pred_check_branch
          %343 = sbr.rel (%p341) target = $region32
        $region31: #{sentence_classifier_forward.1} parent=11 // pred_region
          _
        $region32: #{sentence_classifier_forward.1} parent=11 // pred_fallthru
          _
        // Predicated region
        $region33: #{sentence_classifier_forward.1} parent=11 // pred_check
          %p344 = pneg %p146
        $region34: #{sentence_classifier_forward.1} parent=11 // pred_check_branch
          %346 = sbr.rel (%p344) target = $region36
        $region35: #{sentence_classifier_forward.1} parent=11 // pred_region
          _
        $region36: #{sentence_classifier_forward.1} parent=11 // pred_fallthru
          _
        // Predicated region
        $region37: #{sentence_classifier_forward.1} parent=11 // pred_check
          %p347 = pneg %p167
        $region38: #{sentence_classifier_forward.1} parent=11 // pred_check_branch
          %349 = sbr.rel (%p347) target = $region40
        $region39: #{sentence_classifier_forward.1} parent=11 // pred_region
          _
        $region40: #{sentence_classifier_forward.1} parent=11 // pred_fallthru
          _
        // Predicated region
        $region41: #{sentence_classifier_forward.1} parent=11 // pred_check
          %p350 = pneg %p188
        $region42: #{sentence_classifier_forward.1} parent=11 // pred_check_branch
          %352 = sbr.rel (%p350) target = $region44
        $region43: #{sentence_classifier_forward.1} parent=11 // pred_region
          _
        $region44: #{sentence_classifier_forward.1} parent=11 // pred_fallthru
          _
        // Predicated region
        $region45: #{sentence_classifier_forward.1} parent=11 // pred_check
          %p353 = pneg %p209
        $region46: #{sentence_classifier_forward.1} parent=11 // pred_check_branch
          %355 = sbr.rel (%p353) target = $region48
        $region47: #{sentence_classifier_forward.1} parent=11 // pred_region
          _
        $region48: #{sentence_classifier_forward.1} parent=11 // pred_fallthru
          _
        // Predicated region
        $region49: #{sentence_classifier_forward.1} parent=11 // pred_check
          %p356 = pneg %p230
        $region50: #{sentence_classifier_forward.1} parent=11 // pred_check_branch
          %358 = sbr.rel (%p356) target = $region52
        $region51: #{sentence_classifier_forward.1} parent=11 // pred_region
          _
        $region52: #{sentence_classifier_forward.1} parent=11 // pred_fallthru
          _
        // Predicated region
        $region53: #{sentence_classifier_forward.1} parent=11 // pred_check
          %p359 = pneg %p251
        $region54: #{sentence_classifier_forward.1} parent=11 // pred_check_branch
          %361 = sbr.rel (%p359) target = $region56
        $region55: #{sentence_classifier_forward.1} parent=11 // pred_region
          _
        $region56: #{sentence_classifier_forward.1} parent=11 // pred_fallthru
          _
        // Predicated region
        $region57: #{sentence_classifier_forward.1} parent=11 // pred_check
          %p362 = pneg %p272
        $region58: #{sentence_classifier_forward.1} parent=11 // pred_check_branch
          %364 = sbr.rel (%p362) target = $region60
        $region59: #{sentence_classifier_forward.1} parent=11 // pred_region
          _
        $region60: #{sentence_classifier_forward.1} parent=11 // pred_fallthru
          _
        // Predicated region
        $region61: #{sentence_classifier_forward.1} parent=11 // pred_check
          %p365 = pneg %p293
        $region62: #{sentence_classifier_forward.1} parent=11 // pred_check_branch
          %367 = sbr.rel (%p365) target = $region64
        $region63: #{sentence_classifier_forward.1} parent=11 // pred_region
          _
        $region64: #{sentence_classifier_forward.1} parent=11 // pred_fallthru
          _
      $region12: #{sentence_classifier_forward.1} parent=5 // pred_fallthru
        _
      %p368 = scmp.lt.s32.totalorder %s20, 2
      // Predicated region
      $region65: #{sentence_classifier_forward.1} parent=5 // pred_check
        %p369 = pneg %p368
      $region66: #{sentence_classifier_forward.1} parent=5 // pred_check_branch
        %371 = sbr.rel (%p369) target = $region68
      $region67: #{sentence_classifier_forward.1} parent=5 // pred_region
        _
      $region68: #{sentence_classifier_forward.1} parent=5 // pred_fallthru
        _
      %p372 = scmp.le.s32.totalorder 1, %s20
      %p373 = scmp.lt.s32.totalorder %s20, 3
      %p374 = pnand %p372, %p373
      %p375 = pneg %p374
      // Predicated region
      $region69: #{sentence_classifier_forward.1} parent=5 // pred_check
        _
      $region70: #{sentence_classifier_forward.1} parent=5 // pred_check_branch
        %377 = sbr.rel (%p374) target = $region72
      $region71: #{sentence_classifier_forward.1} parent=5 // pred_region
        %s378 = ssub.s32 %s20, 1
        %p379 = pneg %p41
        %p380 = pneg %p38
        %p381 = pneg %p62
        %p382 = pneg %p59
        %p383 = pneg %p83
        %p384 = pneg %p80
        %p385 = pneg %p104
        %p386 = pneg %p101
        %p387 = pneg %p125
        %p388 = pneg %p122
        %p389 = pneg %p146
        %p390 = pneg %p143
        %p391 = pneg %p167
        %p392 = pneg %p164
        %p393 = pneg %p188
        %p394 = pneg %p185
        %p395 = pneg %p209
        %p396 = pneg %p206
        %p397 = pneg %p230
        %p398 = pneg %p227
        %p399 = pneg %p251
        %p400 = pneg %p248
        %p401 = pneg %p272
        %p402 = pneg %p269
        %p403 = pneg %p293
        %p404 = pneg %p290
        %p405 = pneg %p314
        %p406 = pneg %p311
        %p407 = scmp.eq.s32.totalorder %s25, 0
        // Predicated region
        $region73: #{sentence_classifier_forward.1} parent=71 // pred_check
          %p408 = pneg %p407
        $region74: #{sentence_classifier_forward.1} parent=71 // pred_check_branch
          %410 = sbr.rel (%p408) target = $region76
        $region75: #{sentence_classifier_forward.1} parent=71 // pred_region
          %v411 = vld [vmem:[%s0] sm:$0xff]
          %v412 = vld [vmem:[%s0 + $0x8] sm:$0xff]
          %v413 = vlaneseq
          %v414 = vand.u32 %v413, 127
          %415 = vset.pattern.permute.xlu0 0
          %416 = vperm.xlu0 %415, %v411
          %v417 = vpop.permute.xlu0 %416
          %418 = vset.pattern.permute.xlu0 0
          %419 = vperm.xlu0 %418, %v412
          %v420 = vpop.permute.xlu0 %419
          %vm421 = vcmp.eq.s32.totalorder %v414, %v417
          %vm422 = vcmp.eq.s32.totalorder %v414, %v420
          %v423 = vsel %vm421, 1.0, 0.0
          %v424 = vsel %vm422, 1.0, 0.0
          %v425 = vld [vmem:[%s1] sm:$0xff]
          %v426 = vld [vmem:[%s1 + $0x8] sm:$0xff]
          %v427 = vld [vmem:[%s1 + $0x10] sm:$0xff]
          %v428 = vld [vmem:[%s1 + $0x18] sm:$0xff]
          %v429 = vld [vmem:[%s1 + $0x20] sm:$0xff]
          %v430 = vld [vmem:[%s1 + $0x28] sm:$0xff]
          %v431 = vld [vmem:[%s1 + $0x30] sm:$0xff]
          %v432 = vld [vmem:[%s1 + $0x38] sm:$0xff]
          %v433 = vld [vmem:[%s1 + $0x40] sm:$0xff]
          %v434 = vld [vmem:[%s1 + $0x48] sm:$0xff]
          %v435 = vld [vmem:[%s1 + $0x50] sm:$0xff]
          %v436 = vld [vmem:[%s1 + $0x58] sm:$0xff]
          %v437 = vld [vmem:[%s1 + $0x60] sm:$0xf]
          %v438 = vld [vmem:[%s2] sm:$0xff]
          %v439 = vld [vmem:[%s2 + $0x8] sm:$0xff]
          %vm440 = vcmask 818176
          %v442 = vsel %vm440, %v423, 0
          %v445 = vsel %vm440, %v424, 0
          %vm447 = vcmask 1043456
          %v449 = vsel %vm447, %v437, 0
          %451 = vmatprep.subr.mxu0 0.0
          %452 = vmatpush1.msra.mxu0 %v425
          %453 = vmatprep.subr.mxu0 0.0
          %454 = vmatpush1.msra.mxu0 %v426
          %455 = vmatprep.subr.mxu0 0.0
          %456 = vmatpush1.msra.mxu0 %v427
          %457 = vmatprep.subr.mxu0 0.0
          %458 = vmatpush1.msra.mxu0 %v428
          %459 = vmatprep.subr.mxu0 0.0
          %460 = vmatpush1.msra.mxu0 %v429
          %461 = vmatprep.subr.mxu0 0.0
          %462 = vmatpush1.msra.mxu0 %v430
          %463 = vmatprep.subr.mxu0 0.0
          %464 = vmatpush1.msra.mxu0 %v431
          %465 = vmatprep.subr.mxu0 0.0
          %466 = vmatpush1.msra.mxu0 %v432
          %467 = vmatprep.subr.mxu0 0.0
          %468 = vmatpush1.msra.mxu0 %v433
          %469 = vmatprep.subr.mxu0 0.0
          %470 = vmatpush1.msra.mxu0 %v434
          %471 = vmatprep.subr.mxu0 0.0
          %472 = vmatpush1.msra.mxu0 %v435
          %473 = vmatprep.subr.mxu0 0.0
          %474 = vmatpush1.msra.mxu0 %v436
          %475 = vmatprep.subr.mxu0 0.0
          %476 = vmatpush1.msra.mxu0 %v449
          %477 = vmatprep.subr.mxu0 0.0
          %478 = vmatpush1.msra.mxu0 0.0
          %479 = vmatprep.subr.mxu0 0.0
          %480 = vmatpush1.msra.mxu0 0.0
          %481 = vmatprep.subr.mxu0 0.0
          %482 = vmatpush1.msra.mxu0 0.0
          %483 = vmatprep.subr.mxu0 0.0
          %484 = vmatpush1.msra.mxu0 0.0
          %485 = vmatprep.subr.mxu0 0.0
          %486 = vmatpush1.msra.mxu0 0.0
          %487 = vmatprep.subr.mxu0 0.0
          %488 = vmatpush1.msra.mxu0 0.0
          %489 = vmatprep.subr.mxu0 0.0
          %490 = vmatpush1.msra.mxu0 0.0
          %491 = vmatprep.subr.mxu0 0.0
          %492 = vmatpush1.msra.mxu0 0.0
          %493 = vmatprep.subr.mxu0 0.0
          %494 = vmatpush1.msra.mxu0 0.0
          %495 = vmatprep.subr.mxu0 0.0
          %496 = vmatpush1.msra.mxu0 0.0
          %497 = vmatprep.subr.mxu0 0.0
          %498 = vmatpush1.msra.mxu0 0.0
          %499 = vmatprep.subr.mxu0 0.0
          %500 = vmatpush1.msra.mxu0 0.0
          %501 = vmatprep.subr.mxu0 0.0
          %502 = vmatpush1.msra.mxu0 0.0
          %503 = vmatprep.subr.mxu0 0.0
          %504 = vmatpush1.msra.mxu0 0.0
          %505 = vmatprep.subr.mxu0 0.0
          %506 = vmatpush1.msra.mxu0 0.0
          %507 = vmatprep.subr.mxu0 0.0
          %508 = vmatpush1.msra.mxu0 0.0
          %509 = vmatprep.subr.mxu0 0.0
          %510 = vmatpush1.msra.mxu0 0.0
          %511 = vmatprep.subr.mxu0 0.0
          %512 = vmatpush1.msra.mxu0 0.0
          %513 = vmatprep.subr.mxu0 0.0
          %514 = vmatpush1.msra.mxu0 0.0
          %515 = vmatprep.mubr.f32.mxu0 0.0
          %516 = vmatmul.mubr.f32.gmra.mrb[0].mxu0 %v442
          %v517 = vpop.f32.mrb[0].mxu0
          %v518 = vadd.f32 %v438, %v517
          %v519 = vpop.f32.mrb[0].mxu0
          %520 = vmatprep.mubr.f32.mxu0 0.0
          %521 = vmatmul.mubr.f32.gmra.mrb[0].mxu0 %v445
          %v522 = vpop.f32.mrb[0].mxu0
          %v523 = vadd.f32 %v439, %v522
          %v524 = vpop.f32.mrb[0].mxu0
          %525 = vdwg.mxu0
          %v526 = vld [vmem:[%s10] sm:$0x1]
          %v527 = vld [vmem:[%s10 + $0x1] sm:$0x1]
          %vm528 = vcmask 261120
          %v529 = vsel %vm528, %v518, 0.0
          %530 = vadd.xlane.f32.xlu0 %v529
          %v531 = vpop.xlane.xlu0 %530
          %v532 = vsel %vm528, %v523, 0.0
          %533 = vadd.xlane.f32.xlu0 %v532
          %v534 = vpop.xlane.xlu0 %533
          %v535 = vrcp.pop 32.0
          %v536 = vmul.f32 %v531, %v535
          %v537 = vmul.f32 %v534, %v535
          %v538 = vsub.f32 %v518, %v536
          %v539 = vsub.f32 %v523, %v537
          %v540 = vmul.f32 %v538, %v538
          %v541 = vmul.f32 %v539, %v539
          %v542 = vsel %vm528, %v540, 0.0
          %543 = vadd.xlane.f32.xlu0 %v542
          %v544 = vpop.xlane.xlu0 %543
          %v545 = vsel %vm528, %v541, 0.0
          %546 = vadd.xlane.f32.xlu0 %v545
          %v547 = vpop.xlane.xlu0 %546
          %v548 = vmul.f32 %v544, %v535
          %v549 = vmul.f32 %v547, %v535
          %v550 = vadd.f32 %v548, 1e-12
          %v551 = vadd.f32 %v549, 1e-12
          %v552 = vrsqrt.pop %v550
          %v553 = vrsqrt.pop %v551
          %v554 = vmul.f32 %v538, %v552
          %v555 = vmul.f32 %v539, %v553
          %v556 = vlaneseq
          %v557 = vshrl.u32 %v556, 7
          %v558 = vsub.s32 0, %v557
          %v559 = vrot.slane %v526, %v558
          %v560 = vmul.f32 %v554, %v559
          %v561 = vmul.f32 %v555, %v559
          %v562 = vlaneseq
          %v563 = vshrl.u32 %v562, 7
          %v564 = vsub.s32 0, %v563
          %v565 = vrot.slane %v527, %v564
          %v566 = vadd.f32 %v560, %v565
          %v567 = vadd.f32 %v561, %v565
          %568 = vst.msk [vmem:[#allocation2] sm:$0xff] %vm528, %v566
          %569 = vst.msk [vmem:[#allocation2 + $0x8] sm:$0xff] %vm528, %v567
        $region76: #{sentence_classifier_forward.1} parent=71 // pred_fallthru
          _
        %v570 = vld [vmem:[#allocation2] sm:$0xff]
        %v571 = vld [vmem:[#allocation2 + $0x8] sm:$0xff]
        %s572 = smul.u32 %s25, 32
        %s573 = scalar_lea.vmem %s4, %s572
        %v574 = vld [vmem:[%s573] sm:$0xff]
        %v575 = vld [vmem:[%s573 + $0x8] sm:$0xff]
        %v576 = vld [vmem:[%s573 + $0x10] sm:$0xff]
        %v577 = vld [vmem:[%s573 + $0x18] sm:$0xff]
        %s578 = scalar_lea.vmem %s5, %s572
        %v579 = vld [vmem:[%s578] sm:$0xff]
        %v580 = vld [vmem:[%s578 + $0x8] sm:$0xff]
        %v581 = vld [vmem:[%s578 + $0x10] sm:$0xff]
        %v582 = vld [vmem:[%s578 + $0x18] sm:$0xff]
        %s583 = scalar_lea.vmem %s6, %s572
        %v584 = vld [vmem:[%s583] sm:$0xff]
        %v585 = vld [vmem:[%s583 + $0x8] sm:$0xff]
        %v586 = vld [vmem:[%s583 + $0x10] sm:$0xff]
        %v587 = vld [vmem:[%s583 + $0x18] sm:$0xff]
        %s588 = smul.u32 %s25, 64
        %s589 = scalar_lea.vmem %s7, %s588
        %v590 = vld [vmem:[%s589] sm:$0xff]
        %v591 = vld [vmem:[%s589 + $0x8] sm:$0xff]
        %v592 = vld [vmem:[%s589 + $0x10] sm:$0xff]
        %v593 = vld [vmem:[%s589 + $0x18] sm:$0xff]
        %v594 = vld [vmem:[%s589 + $0x20] sm:$0xff]
        %v595 = vld [vmem:[%s589 + $0x28] sm:$0xff]
        %v596 = vld [vmem:[%s589 + $0x30] sm:$0xff]
        %v597 = vld [vmem:[%s589 + $0x38] sm:$0xff]
        %s598 = smul.u32 %s25, 8
        %s599 = scalar_lea.vmem %s8, %s598
        %v600 = vld [vmem:[%s599] sm:$0xff]
        %v601 = vlaneseq
        %v602 = vshrl.u32 %v601, 7
        %v603 = vsub.s32 0, %v602
        %v604 = vrot.slane %v600, %v603
        %vm605 = vcmask 261120
        %v607 = vsel %vm605, %v570, 0
        %v610 = vsel %vm605, %v571, 0
        %612 = vmatprep.subr.mxu0 0.0
        %613 = vmatpush1.msra.mxu0 %v574
        %614 = vmatprep.subr.mxu0 0.0
        %615 = vmatpush1.msra.mxu0 %v575
        %616 = vmatprep.subr.mxu0 0.0
        %617 = vmatpush1.msra.mxu0 %v576
        %618 = vmatprep.subr.mxu0 0.0
        %619 = vmatpush1.msra.mxu0 %v577
        %620 = vmatprep.subr.mxu0 0.0
        %621 = vmatpush1.msra.mxu0 0.0
        %622 = vmatprep.subr.mxu0 0.0
        %623 = vmatpush1.msra.mxu0 0.0
        %624 = vmatprep.subr.mxu0 0.0
        %625 = vmatpush1.msra.mxu0 0.0
        %626 = vmatprep.subr.mxu0 0.0
        %627 = vmatpush1.msra.mxu0 0.0
        %628 = vmatprep.subr.mxu0 0.0
        %629 = vmatpush1.msra.mxu0 0.0
        %630 = vmatprep.subr.mxu0 0.0
        %631 = vmatpush1.msra.mxu0 0.0
        %632 = vmatprep.subr.mxu0 0.0
        %633 = vmatpush1.msra.mxu0 0.0
        %634 = vmatprep.subr.mxu0 0.0
        %635 = vmatpush1.msra.mxu0 0.0
        %636 = vmatprep.subr.mxu0 0.0
        %637 = vmatpush1.msra.mxu0 0.0
        %638 = vmatprep.subr.mxu0 0.0
        %639 = vmatpush1.msra.mxu0 0.0
        %640 = vmatprep.subr.mxu0 0.0
        %641 = vmatpush1.msra.mxu0 0.0
        %642 = vmatprep.subr.mxu0 0.0
        %643 = vmatpush1.msra.mxu0 0.0
        %644 = vmatprep.subr.mxu0 0.0
        %645 = vmatpush1.msra.mxu0 0.0
        %646 = vmatprep.subr.mxu0 0.0
        %647 = vmatpush1.msra.mxu0 0.0
        %648 = vmatprep.subr.mxu0 0.0
        %649 = vmatpush1.msra.mxu0 0.0
        %650 = vmatprep.subr.mxu0 0.0
        %651 = vmatpush1.msra.mxu0 0.0
        %652 = vmatprep.subr.mxu0 0.0
        %653 = vmatpush1.msra.mxu0 0.0
        %654 = vmatprep.subr.mxu0 0.0
        %655 = vmatpush1.msra.mxu0 0.0
        %656 = vmatprep.subr.mxu0 0.0
        %657 = vmatpush1.msra.mxu0 0.0
        %658 = vmatprep.subr.mxu0 0.0
        %659 = vmatpush1.msra.mxu0 0.0
        %660 = vmatprep.subr.mxu0 0.0
        %661 = vmatpush1.msra.mxu0 0.0
        %662 = vmatprep.subr.mxu0 0.0
        %663 = vmatpush1.msra.mxu0 0.0
        %664 = vmatprep.subr.mxu0 0.0
        %665 = vmatpush1.msra.mxu0 0.0
        %666 = vmatprep.subr.mxu0 0.0
        %667 = vmatpush1.msra.mxu0 0.0
        %668 = vmatprep.subr.mxu0 0.0
        %669 = vmatpush1.msra.mxu0 0.0
        %670 = vmatprep.subr.mxu0 0.0
        %671 = vmatpush1.msra.mxu0 0.0
        %672 = vmatprep.subr.mxu0 0.0
        %673 = vmatpush1.msra.mxu0 0.0
        %674 = vmatprep.subr.mxu0 0.0
        %675 = vmatpush1.msra.mxu0 0.0
        %676 = vmatprep.mubr.f32.mxu0 0.0
        %677 = vmatmul.mubr.f32.gmra.mrb[0].mxu0 %v607
        %v678 = vpop.f32.mrb[0].mxu0
        %v679 = vadd.f32 %v604, %v678
        %v680 = vpop.f32.mrb[0].mxu0
        %681 = vmatprep.mubr.f32.mxu0 0.0
        %682 = vmatmul.mubr.f32.gmra.mrb[0].mxu0 %v610
        %v683 = vpop.f32.mrb[0].mxu0
        %v684 = vadd.f32 %v604, %v683
        %v685 = vpop.f32.mrb[0].mxu0
        %686 = vdwg.mxu0
        %v687 = vld [vmem:[%s3] sm:$0xff]
        %v688 = vld [vmem:[%s3 + $0x8] sm:$0xff]
        %691 = vrot.lane.b32.xlu0 %v679, 96
        %v692 = vpop.permute.xlu0 %691
        %693 = vrot.lane.b32.xlu0 %v684, 96
        %v694 = vpop.permute.xlu0 %693
        %vm695 = vcmask 130048
        %v696 = vsel %vm695, %v679, 0
        %v698 = vsel %vm695, %v684, 0
        %v700 = vsel %vm695, %v692, 0
        %v702 = vsel %vm695, %v694, 0
        %704 = vmatprep.subr.mxu0 0.0
        %705 = vmatpush1.xpose.msra.mxu0 %v700
        %706 = vmatprep.subr.mxu0 0.0
        %707 = vmatpush1.xpose.msra.mxu0 %v702
        %708 = vmatprep.subr.mxu0 0.0
        %709 = vmatpush1.xpose.msra.mxu0 0.0
        %710 = vmatprep.subr.mxu0 0.0
        %711 = vmatpush1.xpose.msra.mxu0 0.0
        %712 = vmatprep.subr.mxu0 0.0
        %713 = vmatpush1.xpose.msra.mxu0 0.0
        %714 = vmatprep.subr.mxu0 0.0
        %715 = vmatpush1.xpose.msra.mxu0 0.0
        %716 = vmatprep.subr.mxu0 0.0
        %717 = vmatpush1.xpose.msra.mxu0 0.0
        %718 = vmatprep.subr.mxu0 0.0
        %719 = vmatpush1.xpose.msra.mxu0 0.0
        %720 = vmatprep.subr.mxu0 0.0
        %721 = vmatpush1.xpose.msra.mxu0 0.0
        %722 = vmatprep.subr.mxu0 0.0
        %723 = vmatpush1.xpose.msra.mxu0 0.0
        %724 = vmatprep.subr.mxu0 0.0
        %725 = vmatpush1.xpose.msra.mxu0 0.0
        %726 = vmatprep.subr.mxu0 0.0
        %727 = vmatpush1.xpose.msra.mxu0 0.0
        %728 = vmatprep.subr.mxu0 0.0
        %729 = vmatpush1.xpose.msra.mxu0 0.0
        %730 = vmatprep.subr.mxu0 0.0
        %731 = vmatpush1.xpose.msra.mxu0 0.0
        %732 = vmatprep.subr.mxu0 0.0
        %733 = vmatpush1.xpose.msra.mxu0 0.0
        %734 = vmatprep.subr.mxu0 0.0
        %735 = vmatpush1.xpose.msra.mxu0 0.0
        %736 = vmatprep.subr.mxu0 0.0
        %737 = vmatpush1.xpose.msra.mxu0 0.0
        %738 = vmatprep.subr.mxu0 0.0
        %739 = vmatpush1.xpose.msra.mxu0 0.0
        %740 = vmatprep.subr.mxu0 0.0
        %741 = vmatpush1.xpose.msra.mxu0 0.0
        %742 = vmatprep.subr.mxu0 0.0
        %743 = vmatpush1.xpose.msra.mxu0 0.0
        %744 = vmatprep.subr.mxu0 0.0
        %745 = vmatpush1.xpose.msra.mxu0 0.0
        %746 = vmatprep.subr.mxu0 0.0
        %747 = vmatpush1.xpose.msra.mxu0 0.0
        %748 = vmatprep.subr.mxu0 0.0
        %749 = vmatpush1.xpose.msra.mxu0 0.0
        %750 = vmatprep.subr.mxu0 0.0
        %751 = vmatpush1.xpose.msra.mxu0 0.0
        %752 = vmatprep.subr.mxu0 0.0
        %753 = vmatpush1.xpose.msra.mxu0 0.0
        %754 = vmatprep.subr.mxu0 0.0
        %755 = vmatpush1.xpose.msra.mxu0 0.0
        %756 = vmatprep.subr.mxu0 0.0
        %757 = vmatpush1.xpose.msra.mxu0 0.0
        %758 = vmatprep.subr.mxu0 0.0
        %759 = vmatpush1.xpose.msra.mxu0 0.0
        %760 = vmatprep.subr.mxu0 0.0
        %761 = vmatpush1.xpose.msra.mxu0 0.0
        %762 = vmatprep.subr.mxu0 0.0
        %763 = vmatpush1.xpose.msra.mxu0 0.0
        %764 = vmatprep.subr.mxu0 0.0
        %765 = vmatpush1.xpose.msra.mxu0 0.0
        %766 = vmatprep.subr.mxu0 0.0
        %767 = vmatpush1.xpose.msra.mxu0 0.0
        %768 = vmatprep.mubr.f32.mxu0 0.0
        %769 = vmatmul.mubr.f32.gmra.mrb[0].mxu0 %v696
        %v770 = vpop.f32.mrb[0].mxu0
        %v771 = vadd.f32 0.0, %v770
        %v772 = vpop.f32.mrb[0].mxu0
        %773 = vmatprep.mubr.f32.mxu0 0.0
        %774 = vmatmul.mubr.f32.gmra.mrb[0].mxu0 %v698
        %v775 = vpop.f32.mrb[0].mxu0
        %v776 = vadd.f32 0.0, %v775
        %v777 = vpop.f32.mrb[0].mxu0
        %778 = vdwg.mxu0
        %v779 = vmul.f32 %v771, 0.25
        %v780 = vmul.f32 %v776, 0.25
        %v781 = vadd.f32 %v779, %v687
        %v782 = vadd.f32 %v780, %v688
        %v783 = vsel %vm695, %v781, -inf
        %784 = vmax.xlane.f32.xlu0 %v783
        %v785 = vpop.xlane.xlu0 %784
        %v786 = vsel %vm695, %v782, -inf
        %787 = vmax.xlane.f32.xlu0 %v786
        %v788 = vpop.xlane.xlu0 %787
        %v789 = vsub.f32 %v781, %v785
        %v790 = vsub.f32 %v782, %v788
        %v791 = vmul.f32 %v789, 1.442695
        %v792 = vpow.pop %v791
        %v793 = vmul.f32 %v790, 1.442695
        %v794 = vpow.pop %v793
        %v795 = vsel %vm695, %v792, 0.0
        %796 = vadd.xlane.f32.xlu0 %v795
        %v797 = vpop.xlane.xlu0 %796
        %v798 = vsel %vm695, %v794, 0.0
        %799 = vadd.xlane.f32.xlu0 %v798
        %v800 = vpop.xlane.xlu0 %799
        %v801 = vrcp.pop %v797
        %v802 = vrcp.pop %v800
        %v803 = vmul.f32 %v792, %v801
        %v804 = vmul.f32 %v794, %v802
        %805 = vrot.lane.b32.xlu0 %v679, 64
        %v806 = vpop.permute.xlu0 %805
        %807 = vrot.lane.b32.xlu0 %v684, 64
        %v808 = vpop.permute.xlu0 %807
        %v812 = vsel %vm695, %v803, 0
        %v815 = vsel %vm695, %v804, 0
        %817 = vmatprep.subr.mxu0 0.0
        %818 = vmatpush1.msra.mxu0 %v806
        %819 = vmatprep.subr.mxu0 0.0
        %820 = vmatpush1.msra.mxu0 %v808
        %821 = vmatprep.subr.mxu0 0.0
        %822 = vmatpush1.msra.mxu0 0.0
        %823 = vmatprep.subr.mxu0 0.0
        %824 = vmatpush1.msra.mxu0 0.0
        %825 = vmatprep.subr.mxu0 0.0
        %826 = vmatpush1.msra.mxu0 0.0
        %827 = vmatprep.subr.mxu0 0.0
        %828 = vmatpush1.msra.mxu0 0.0
        %829 = vmatprep.subr.mxu0 0.0
        %830 = vmatpush1.msra.mxu0 0.0
        %831 = vmatprep.subr.mxu0 0.0
        %832 = vmatpush1.msra.mxu0 0.0
        %833 = vmatprep.subr.mxu0 0.0
        %834 = vmatpush1.msra.mxu0 0.0
        %835 = vmatprep.subr.mxu0 0.0
        %836 = vmatpush1.msra.mxu0 0.0
        %837 = vmatprep.subr.mxu0 0.0
        %838 = vmatpush1.msra.mxu0 0.0
        %839 = vmatprep.subr.mxu0 0.0
        %840 = vmatpush1.msra.mxu0 0.0
        %841 = vmatprep.subr.mxu0 0.0
        %842 = vmatpush1.msra.mxu0 0.0
        %843 = vmatprep.subr.mxu0 0.0
        %844 = vmatpush1.msra.mxu0 0.0
        %845 = vmatprep.subr.mxu0 0.0
        %846 = vmatpush1.msra.mxu0 0.0
        %847 = vmatprep.subr.mxu0 0.0
        %848 = vmatpush1.msra.mxu0 0.0
        %849 = vmatprep.subr.mxu0 0.0
        %850 = vmatpush1.msra.mxu0 0.0
        %851 = vmatprep.subr.mxu0 0.0
        %852 = vmatpush1.msra.mxu0 0.0
        %853 = vmatprep.subr.mxu0 0.0
        %854 = vmatpush1.msra.mxu0 0.0
        %855 = vmatprep.subr.mxu0 0.0
        %856 = vmatpush1.msra.mxu0 0.0
        %857 = vmatprep.subr.mxu0 0.0
        %858 = vmatpush1.msra.mxu0 0.0
        %859 = vmatprep.subr.mxu0 0.0
        %860 = vmatpush1.msra.mxu0 0.0
        %861 = vmatprep.subr.mxu0 0.0
        %862 = vmatpush1.msra.mxu0 0.0
        %863 = vmatprep.subr.mxu0 0.0
        %864 = vmatpush1.msra.mxu0 0.0
        %865 = vmatprep.subr.mxu0 0.0
        %866 = vmatpush1.msra.mxu0 0.0
        %867 = vmatprep.subr.mxu0 0.0
        %868 = vmatpush1.msra.mxu0 0.0
        %869 = vmatprep.subr.mxu0 0.0
        %870 = vmatpush1.msra.mxu0 0.0
        %871 = vmatprep.subr.mxu0 0.0
        %872 = vmatpush1.msra.mxu0 0.0
        %873 = vmatprep.subr.mxu0 0.0
        %874 = vmatpush1.msra.mxu0 0.0
        %875 = vmatprep.subr.mxu0 0.0
        %876 = vmatpush1.msra.mxu0 0.0
        %877 = vmatprep.subr.mxu0 0.0
        %878 = vmatpush1.msra.mxu0 0.0
        %879 = vmatprep.subr.mxu0 0.0
        %880 = vmatpush1.msra.mxu0 0.0
        %881 = vmatprep.mubr.f32.mxu0 0.0
        %882 = vmatmul.mubr.f32.gmra.mrb[0].mxu0 %v812
        %v883 = vpop.f32.mrb[0].mxu0
        %v884 = vadd.f32 0.0, %v883
        %v885 = vpop.f32.mrb[0].mxu0
        %886 = vmatprep.mubr.f32.mxu0 0.0
        %887 = vmatmul.mubr.f32.gmra.mrb[0].mxu0 %v815
        %v888 = vpop.f32.mrb[0].mxu0
        %v889 = vadd.f32 0.0, %v888
        %v890 = vpop.f32.mrb[0].mxu0
        %891 = vdwg.mxu0
        %892 = vrot.lane.b32.xlu0 %v679, 112
        %v893 = vpop.permute.xlu0 %892
        %894 = vrot.lane.b32.xlu0 %v684, 112
        %v895 = vpop.permute.xlu0 %894
        %896 = vrot.lane.b32.xlu0 %v679, 80
        %v897 = vpop.permute.xlu0 %896
        %898 = vrot.lane.b32.xlu0 %v684, 80
        %v899 = vpop.permute.xlu0 %898
        %v900 = vsel %vm695, %v893, 0
        %v902 = vsel %vm695, %v895, 0
        %v904 = vsel %vm695, %v897, 0
        %v906 = vsel %vm695, %v899, 0
        %908 = vmatprep.subr.mxu0 0.0
        %909 = vmatpush1.xpose.msra.mxu0 %v904
        %910 = vmatprep.subr.mxu0 0.0
        %911 = vmatpush1.xpose.msra.mxu0 %v906
        %912 = vmatprep.subr.mxu0 0.0
        %913 = vmatpush1.xpose.msra.mxu0 0.0
        %914 = vmatprep.subr.mxu0 0.0
        %915 = vmatpush1.xpose.msra.mxu0 0.0
        %916 = vmatprep.subr.mxu0 0.0
        %917 = vmatpush1.xpose.msra.mxu0 0.0
        %918 = vmatprep.subr.mxu0 0.0
        %919 = vmatpush1.xpose.msra.mxu0 0.0
        %920 = vmatprep.subr.mxu0 0.0
        %921 = vmatpush1.xpose.msra.mxu0 0.0
        %922 = vmatprep.subr.mxu0 0.0
        %923 = vmatpush1.xpose.msra.mxu0 0.0
        %924 = vmatprep.subr.mxu0 0.0
        %925 = vmatpush1.xpose.msra.mxu0 0.0
        %926 = vmatprep.subr.mxu0 0.0
        %927 = vmatpush1.xpose.msra.mxu0 0.0
        %928 = vmatprep.subr.mxu0 0.0
        %929 = vmatpush1.xpose.msra.mxu0 0.0
        %930 = vmatprep.subr.mxu0 0.0
        %931 = vmatpush1.xpose.msra.mxu0 0.0
        %932 = vmatprep.subr.mxu0 0.0
        %933 = vmatpush1.xpose.msra.mxu0 0.0
        %934 = vmatprep.subr.mxu0 0.0
        %935 = vmatpush1.xpose.msra.mxu0 0.0
        %936 = vmatprep.subr.mxu0 0.0
        %937 = vmatpush1.xpose.msra.mxu0 0.0
        %938 = vmatprep.subr.mxu0 0.0
        %939 = vmatpush1.xpose.msra.mxu0 0.0
        %940 = vmatprep.subr.mxu0 0.0
        %941 = vmatpush1.xpose.msra.mxu0 0.0
        %942 = vmatprep.subr.mxu0 0.0
        %943 = vmatpush1.xpose.msra.mxu0 0.0
        %944 = vmatprep.subr.mxu0 0.0
        %945 = vmatpush1.xpose.msra.mxu0 0.0
        %946 = vmatprep.subr.mxu0 0.0
        %947 = vmatpush1.xpose.msra.mxu0 0.0
        %948 = vmatprep.subr.mxu0 0.0
        %949 = vmatpush1.xpose.msra.mxu0 0.0
        %950 = vmatprep.subr.mxu0 0.0
        %951 = vmatpush1.xpose.msra.mxu0 0.0
        %952 = vmatprep.subr.mxu0 0.0
        %953 = vmatpush1.xpose.msra.mxu0 0.0
        %954 = vmatprep.subr.mxu0 0.0
        %955 = vmatpush1.xpose.msra.mxu0 0.0
        %956 = vmatprep.subr.mxu0 0.0
        %957 = vmatpush1.xpose.msra.mxu0 0.0
        %958 = vmatprep.subr.mxu0 0.0
        %959 = vmatpush1.xpose.msra.mxu0 0.0
        %960 = vmatprep.subr.mxu0 0.0
        %961 = vmatpush1.xpose.msra.mxu0 0.0
        %962 = vmatprep.subr.mxu0 0.0
        %963 = vmatpush1.xpose.msra.mxu0 0.0
        %964 = vmatprep.subr.mxu0 0.0
        %965 = vmatpush1.xpose.msra.mxu0 0.0
        %966 = vmatprep.subr.mxu0 0.0
        %967 = vmatpush1.xpose.msra.mxu0 0.0
        %968 = vmatprep.subr.mxu0 0.0
        %969 = vmatpush1.xpose.msra.mxu0 0.0
        %970 = vmatprep.subr.mxu0 0.0
        %971 = vmatpush1.xpose.msra.mxu0 0.0
        %972 = vmatprep.mubr.f32.mxu0 0.0
        %973 = vmatmul.mubr.f32.gmra.mrb[0].mxu0 %v900
        %v974 = vpop.f32.mrb[0].mxu0
        %v975 = vadd.f32 0.0, %v974
        %v976 = vpop.f32.mrb[0].mxu0
        %977 = vmatprep.mubr.f32.mxu0 0.0
        %978 = vmatmul.mubr.f32.gmra.mrb[0].mxu0 %v902
        %v979 = vpop.f32.mrb[0].mxu0
        %v980 = vadd.f32 0.0, %v979
        %v981 = vpop.f32.mrb[0].mxu0
        %982 = vdwg.mxu0
        %v983 = vmul.f32 %v975, 0.25
        %v984 = vmul.f32 %v980, 0.25
        %v985 = vadd.f32 %v983, %v687
        %v986 = vadd.f32 %v984, %v688
        %v987 = vsel %vm695, %v985, -inf
        %988 = vmax.xlane.f32.xlu0 %v987
        %v989 = vpop.xlane.xlu0 %988
        %v990 = vsel %vm695, %v986, -inf
        %991 = vmax.xlane.f32.xlu0 %v990
        %v992 = vpop.xlane.xlu0 %991
        %v993 = vsub.f32 %v985, %v989
        %v994 = vsub.f32 %v986, %v992
        %v995 = vmul.f32 %v993, 1.442695
        %v996 = vpow.pop %v995
        %v997 = vmul.f32 %v994, 1.442695
        %v998 = vpow.pop %v997
        %v999 = vsel %vm695, %v996, 0.0
        %1000 = vadd.xlane.f32.xlu0 %v999
        %v1001 = vpop.xlane.xlu0 %1000
        %v1002 = vsel %vm695, %v998, 0.0
        %1003 = vadd.xlane.f32.xlu0 %v1002
        %v1004 = vpop.xlane.xlu0 %1003
        %v1005 = vrcp.pop %v1001
        %v1006 = vrcp.pop %v1004
        %v1007 = vmul.f32 %v996, %v1005
        %v1008 = vmul.f32 %v998, %v1006
        %1009 = vrot.lane.b32.xlu0 %v679, 48
        %v1010 = vpop.permute.xlu0 %1009
        %1011 = vrot.lane.b32.xlu0 %v684, 48
        %v1012 = vpop.permute.xlu0 %1011
        %v1016 = vsel %vm695, %v1007, 0
        %v1019 = vsel %vm695, %v1008, 0
        %1021 = vmatprep.subr.mxu0 0.0
        %1022 = vmatpush1.msra.mxu0 %v1010
        %1023 = vmatprep.subr.mxu0 0.0
        %1024 = vmatpush1.msra.mxu0 %v1012
        %1025 = vmatprep.subr.mxu0 0.0
        %1026 = vmatpush1.msra.mxu0 0.0
        %1027 = vmatprep.subr.mxu0 0.0
        %1028 = vmatpush1.msra.mxu0 0.0
        %1029 = vmatprep.subr.mxu0 0.0
        %1030 = vmatpush1.msra.mxu0 0.0
        %1031 = vmatprep.subr.mxu0 0.0
        %1032 = vmatpush1.msra.mxu0 0.0
        %1033 = vmatprep.subr.mxu0 0.0
        %1034 = vmatpush1.msra.mxu0 0.0
        %1035 = vmatprep.subr.mxu0 0.0
        %1036 = vmatpush1.msra.mxu0 0.0
        %1037 = vmatprep.subr.mxu0 0.0
        %1038 = vmatpush1.msra.mxu0 0.0
        %1039 = vmatprep.subr.mxu0 0.0
        %1040 = vmatpush1.msra.mxu0 0.0
        %1041 = vmatprep.subr.mxu0 0.0
        %1042 = vmatpush1.msra.mxu0 0.0
        %1043 = vmatprep.subr.mxu0 0.0
        %1044 = vmatpush1.msra.mxu0 0.0
        %1045 = vmatprep.subr.mxu0 0.0
        %1046 = vmatpush1.msra.mxu0 0.0
        %1047 = vmatprep.subr.mxu0 0.0
        %1048 = vmatpush1.msra.mxu0 0.0
        %1049 = vmatprep.subr.mxu0 0.0
        %1050 = vmatpush1.msra.mxu0 0.0
        %1051 = vmatprep.subr.mxu0 0.0
        %1052 = vmatpush1.msra.mxu0 0.0
        %1053 = vmatprep.subr.mxu0 0.0
        %1054 = vmatpush1.msra.mxu0 0.0
        %1055 = vmatprep.subr.mxu0 0.0
        %1056 = vmatpush1.msra.mxu0 0.0
        %1057 = vmatprep.subr.mxu0 0.0
        %1058 = vmatpush1.msra.mxu0 0.0
        %1059 = vmatprep.subr.mxu0 0.0
        %1060 = vmatpush1.msra.mxu0 0.0
        %1061 = vmatprep.subr.mxu0 0.0
        %1062 = vmatpush1.msra.mxu0 0.0
        %1063 = vmatprep.subr.mxu0 0.0
        %1064 = vmatpush1.msra.mxu0 0.0
        %1065 = vmatprep.subr.mxu0 0.0
        %1066 = vmatpush1.msra.mxu0 0.0
        %1067 = vmatprep.subr.mxu0 0.0
        %1068 = vmatpush1.msra.mxu0 0.0
        %1069 = vmatprep.subr.mxu0 0.0
        %1070 = vmatpush1.msra.mxu0 0.0
        %1071 = vmatprep.subr.mxu0 0.0
        %1072 = vmatpush1.msra.mxu0 0.0
        %1073 = vmatprep.subr.mxu0 0.0
        %1074 = vmatpush1.msra.mxu0 0.0
        %1075 = vmatprep.subr.mxu0 0.0
        %1076 = vmatpush1.msra.mxu0 0.0
        %1077 = vmatprep.subr.mxu0 0.0
        %1078 = vmatpush1.msra.mxu0 0.0
        %1079 = vmatprep.subr.mxu0 0.0
        %1080 = vmatpush1.msra.mxu0 0.0
        %1081 = vmatprep.subr.mxu0 0.0
        %1082 = vmatpush1.msra.mxu0 0.0
        %1083 = vmatprep.subr.mxu0 0.0
        %1084 = vmatpush1.msra.mxu0 0.0
        %1085 = vmatprep.mubr.f32.mxu0 0.0
        %1086 = vmatmul.mubr.f32.gmra.mrb[0].mxu0 %v1016
        %v1087 = vpop.f32.mrb[0].mxu0
        %v1088 = vadd.f32 0.0, %v1087
        %v1089 = vpop.f32.mrb[0].mxu0
        %1090 = vmatprep.mubr.f32.mxu0 0.0
        %1091 = vmatmul.mubr.f32.gmra.mrb[0].mxu0 %v1019
        %v1092 = vpop.f32.mrb[0].mxu0
        %v1093 = vadd.f32 0.0, %v1092
        %v1094 = vpop.f32.mrb[0].mxu0
        %1095 = vdwg.mxu0
        %v1097 = vsel %vm695, %v1088, 0
        %v1100 = vsel %vm695, %v1093, 0
        %1102 = vmatprep.subr.mxu0 0.0
        %1103 = vmatpush1.msra.mxu0 %v581
        %1104 = vmatprep.subr.mxu0 0.0
        %1105 = vmatpush1.msra.mxu0 %v582
        %1106 = vmatprep.subr.mxu0 0.0
        %1107 = vmatpush1.msra.mxu0 0.0
        %1108 = vmatprep.subr.mxu0 0.0
        %1109 = vmatpush1.msra.mxu0 0.0
        %1110 = vmatprep.subr.mxu0 0.0
        %1111 = vmatpush1.msra.mxu0 0.0
        %1112 = vmatprep.subr.mxu0 0.0
        %1113 = vmatpush1.msra.mxu0 0.0
        %1114 = vmatprep.subr.mxu0 0.0
        %1115 = vmatpush1.msra.mxu0 0.0
        %1116 = vmatprep.subr.mxu0 0.0
        %1117 = vmatpush1.msra.mxu0 0.0
        %1118 = vmatprep.subr.mxu0 0.0
        %1119 = vmatpush1.msra.mxu0 0.0
        %1120 = vmatprep.subr.mxu0 0.0
        %1121 = vmatpush1.msra.mxu0 0.0
        %1122 = vmatprep.subr.mxu0 0.0
        %1123 = vmatpush1.msra.mxu0 0.0
        %1124 = vmatprep.subr.mxu0 0.0
        %1125 = vmatpush1.msra.mxu0 0.0
        %1126 = vmatprep.subr.mxu0 0.0
        %1127 = vmatpush1.msra.mxu0 0.0
        %1128 = vmatprep.subr.mxu0 0.0
        %1129 = vmatpush1.msra.mxu0 0.0
        %1130 = vmatprep.subr.mxu0 0.0
        %1131 = vmatpush1.msra.mxu0 0.0
        %1132 = vmatprep.subr.mxu0 0.0
        %1133 = vmatpush1.msra.mxu0 0.0
        %1134 = vmatprep.subr.mxu0 0.0
        %1135 = vmatpush1.msra.mxu0 0.0
        %1136 = vmatprep.subr.mxu0 0.0
        %1137 = vmatpush1.msra.mxu0 0.0
        %1138 = vmatprep.subr.mxu0 0.0
        %1139 = vmatpush1.msra.mxu0 0.0
        %1140 = vmatprep.subr.mxu0 0.0
        %1141 = vmatpush1.msra.mxu0 0.0
        %1142 = vmatprep.subr.mxu0 0.0
        %1143 = vmatpush1.msra.mxu0 0.0
        %1144 = vmatprep.subr.mxu0 0.0
        %1145 = vmatpush1.msra.mxu0 0.0
        %1146 = vmatprep.subr.mxu0 0.0
        %1147 = vmatpush1.msra.mxu0 0.0
        %1148 = vmatprep.subr.mxu0 0.0
        %1149 = vmatpush1.msra.mxu0 0.0
        %1150 = vmatprep.subr.mxu0 0.0
        %1151 = vmatpush1.msra.mxu0 0.0
        %1152 = vmatprep.subr.mxu0 0.0
        %1153 = vmatpush1.msra.mxu0 0.0
        %1154 = vmatprep.subr.mxu0 0.0
        %1155 = vmatpush1.msra.mxu0 0.0
        %1156 = vmatprep.subr.mxu0 0.0
        %1157 = vmatpush1.msra.mxu0 0.0
        %1158 = vmatprep.subr.mxu0 0.0
        %1159 = vmatpush1.msra.mxu0 0.0
        %1160 = vmatprep.subr.mxu0 0.0
        %1161 = vmatpush1.msra.mxu0 0.0
        %1162 = vmatprep.subr.mxu0 0.0
        %1163 = vmatpush1.msra.mxu0 0.0
        %1164 = vmatprep.subr.mxu0 0.0
        %1165 = vmatpush1.msra.mxu0 0.0
        %1166 = vmatprep.mubr.f32.mxu0 0.0
        %1167 = vmatmul.mubr.f32.gmra.mrb[0].mxu0 %v1097
        %v1168 = vpop.f32.mrb[0].mxu0
        %v1169 = vadd.f32 0.0, %v1168
        %v1170 = vpop.f32.mrb[0].mxu0
        %1171 = vmatprep.mubr.f32.mxu0 0.0
        %1172 = vmatmul.mubr.f32.gmra.mrb[0].mxu0 %v1100
        %v1173 = vpop.f32.mrb[0].mxu0
        %v1174 = vadd.f32 0.0, %v1173
        %v1175 = vpop.f32.mrb[0].mxu0
        %1176 = vdwg.mxu0
        %v1178 = vsel %vm695, %v884, 0
        %v1181 = vsel %vm695, %v889, 0
        %1183 = vmatprep.subr.mxu0 0.0
        %1184 = vmatpush1.msra.mxu0 %v579
        %1185 = vmatprep.subr.mxu0 0.0
        %1186 = vmatpush1.msra.mxu0 %v580
        %1187 = vmatprep.subr.mxu0 0.0
        %1188 = vmatpush1.msra.mxu0 0.0
        %1189 = vmatprep.subr.mxu0 0.0
        %1190 = vmatpush1.msra.mxu0 0.0
        %1191 = vmatprep.subr.mxu0 0.0
        %1192 = vmatpush1.msra.mxu0 0.0
        %1193 = vmatprep.subr.mxu0 0.0
        %1194 = vmatpush1.msra.mxu0 0.0
        %1195 = vmatprep.subr.mxu0 0.0
        %1196 = vmatpush1.msra.mxu0 0.0
        %1197 = vmatprep.subr.mxu0 0.0
        %1198 = vmatpush1.msra.mxu0 0.0
        %1199 = vmatprep.subr.mxu0 0.0
        %1200 = vmatpush1.msra.mxu0 0.0
        %1201 = vmatprep.subr.mxu0 0.0
        %1202 = vmatpush1.msra.mxu0 0.0
        %1203 = vmatprep.subr.mxu0 0.0
        %1204 = vmatpush1.msra.mxu0 0.0
        %1205 = vmatprep.subr.mxu0 0.0
        %1206 = vmatpush1.msra.mxu0 0.0
        %1207 = vmatprep.subr.mxu0 0.0
        %1208 = vmatpush1.msra.mxu0 0.0
        %1209 = vmatprep.subr.mxu0 0.0
        %1210 = vmatpush1.msra.mxu0 0.0
        %1211 = vmatprep.subr.mxu0 0.0
        %1212 = vmatpush1.msra.mxu0 0.0
        %1213 = vmatprep.subr.mxu0 0.0
        %1214 = vmatpush1.msra.mxu0 0.0
        %1215 = vmatprep.subr.mxu0 0.0
        %1216 = vmatpush1.msra.mxu0 0.0
        %1217 = vmatprep.subr.mxu0 0.0
        %1218 = vmatpush1.msra.mxu0 0.0
        %1219 = vmatprep.subr.mxu0 0.0
        %1220 = vmatpush1.msra.mxu0 0.0
        %1221 = vmatprep.subr.mxu0 0.0
        %1222 = vmatpush1.msra.mxu0 0.0
        %1223 = vmatprep.subr.mxu0 0.0
        %1224 = vmatpush1.msra.mxu0 0.0
        %1225 = vmatprep.subr.mxu0 0.0
        %1226 = vmatpush1.msra.mxu0 0.0
        %1227 = vmatprep.subr.mxu0 0.0
        %1228 = vmatpush1.msra.mxu0 0.0
        %1229 = vmatprep.subr.mxu0 0.0
        %1230 = vmatpush1.msra.mxu0 0.0
        %1231 = vmatprep.subr.mxu0 0.0
        %1232 = vmatpush1.msra.mxu0 0.0
        %1233 = vmatprep.subr.mxu0 0.0
        %1234 = vmatpush1.msra.mxu0 0.0
        %1235 = vmatprep.subr.mxu0 0.0
        %1236 = vmatpush1.msra.mxu0 0.0
        %1237 = vmatprep.subr.mxu0 0.0
        %1238 = vmatpush1.msra.mxu0 0.0
        %1239 = vmatprep.subr.mxu0 0.0
        %1240 = vmatpush1.msra.mxu0 0.0
        %1241 = vmatprep.subr.mxu0 0.0
        %1242 = vmatpush1.msra.mxu0 0.0
        %1243 = vmatprep.subr.mxu0 0.0
        %1244 = vmatpush1.msra.mxu0 0.0
        %1245 = vmatprep.subr.mxu0 0.0
        %1246 = vmatpush1.msra.mxu0 0.0
        %1247 = vmatprep.mubr.f32.mxu0 0.0
        %1248 = vmatmul.mubr.f32.gmra.mrb[0].mxu0 %v1178
        %v1249 = vpop.f32.mrb[0].mxu0
        %v1250 = vadd.f32 %v1169, %v1249
        %v1251 = vpop.f32.mrb[0].mxu0
        %1252 = vmatprep.mubr.f32.mxu0 0.0
        %1253 = vmatmul.mubr.f32.gmra.mrb[0].mxu0 %v1181
        %v1254 = vpop.f32.mrb[0].mxu0
        %v1255 = vadd.f32 %v1174, %v1254
        %v1256 = vpop.f32.mrb[0].mxu0
        %1257 = vdwg.mxu0
        %v1258 = vlaneseq
        %v1259 = vshrl.u32 %v1258, 7
        %v1260 = vsub.s32 1, %v1259
        %v1261 = vrot.slane %v600, %v1260
        %v1262 = vadd.f32 %v1250, %v1261
        %v1263 = vadd.f32 %v1255, %v1261
        %v1264 = vadd.f32 %v1262, %v570
        %v1265 = vadd.f32 %v1263, %v571
        %v1266 = vsel %vm605, %v1264, 0.0
        %1267 = vadd.xlane.f32.xlu0 %v1266
        %v1268 = vpop.xlane.xlu0 %1267
        %v1269 = vsel %vm605, %v1265, 0.0
        %1270 = vadd.xlane.f32.xlu0 %v1269
        %v1271 = vpop.xlane.xlu0 %1270
        %v1272 = vrcp.pop 32.0
        %v1273 = vmul.f32 %v1268, %v1272
        %v1274 = vmul.f32 %v1271, %v1272
        %v1275 = vsub.f32 %v1264, %v1273
        %v1276 = vsub.f32 %v1265, %v1274
        %v1277 = vmul.f32 %v1275, %v1275
        %v1278 = vmul.f32 %v1276, %v1276
        %v1279 = vsel %vm605, %v1277, 0.0
        %1280 = vadd.xlane.f32.xlu0 %v1279
        %v1281 = vpop.xlane.xlu0 %1280
        %v1282 = vsel %vm605, %v1278, 0.0
        %1283 = vadd.xlane.f32.xlu0 %v1282
        %v1284 = vpop.xlane.xlu0 %1283
        %v1285 = vmul.f32 %v1281, %v1272
        %v1286 = vmul.f32 %v1284, %v1272
        %v1287 = vadd.f32 %v1285, 1e-12
        %v1288 = vadd.f32 %v1286, 1e-12
        %v1289 = vrsqrt.pop %v1287
        %v1290 = vrsqrt.pop %v1288
        %v1291 = vmul.f32 %v1275, %v1289
        %v1292 = vmul.f32 %v1276, %v1290
        %v1293 = vlaneseq
        %v1294 = vshrl.u32 %v1293, 7
        %v1295 = vsub.s32 2, %v1294
        %v1296 = vrot.slane %v600, %v1295
        %v1297 = vmul.f32 %v1291, %v1296
        %v1298 = vmul.f32 %v1292, %v1296
        %v1299 = vlaneseq
        %v1300 = vshrl.u32 %v1299, 7
        %v1301 = vsub.s32 3, %v1300
        %v1302 = vrot.slane %v600, %v1301
        %v1303 = vadd.f32 %v1297, %v1302
        %v1304 = vadd.f32 %v1298, %v1302
        %v1305 = vlaneseq
        %v1306 = vshrl.u32 %v1305, 7
        %v1307 = vsub.s32 4, %v1306
        %v1308 = vrot.slane %v600, %v1307
        %v1310 = vsel %vm605, %v1303, 0
        %v1313 = vsel %vm605, %v1304, 0
        %1315 = vmatprep.subr.mxu0 0.0
        %1316 = vmatpush1.msra.mxu0 %v584
        %1317 = vmatprep.subr.mxu0 0.0
        %1318 = vmatpush1.msra.mxu0 %v585
        %1319 = vmatprep.subr.mxu0 0.0
        %1320 = vmatpush1.msra.mxu0 %v586
        %1321 = vmatprep.subr.mxu0 0.0
        %1322 = vmatpush1.msra.mxu0 %v587
        %1323 = vmatprep.subr.mxu0 0.0
        %1324 = vmatpush1.msra.mxu0 0.0
        %1325 = vmatprep.subr.mxu0 0.0
        %1326 = vmatpush1.msra.mxu0 0.0
        %1327 = vmatprep.subr.mxu0 0.0
        %1328 = vmatpush1.msra.mxu0 0.0
        %1329 = vmatprep.subr.mxu0 0.0
        %1330 = vmatpush1.msra.mxu0 0.0
        %1331 = vmatprep.subr.mxu0 0.0
        %1332 = vmatpush1.msra.mxu0 0.0
        %1333 = vmatprep.subr.mxu0 0.0
        %1334 = vmatpush1.msra.mxu0 0.0
        %1335 = vmatprep.subr.mxu0 0.0
        %1336 = vmatpush1.msra.mxu0 0.0
        %1337 = vmatprep.subr.mxu0 0.0
        %1338 = vmatpush1.msra.mxu0 0.0
        %1339 = vmatprep.subr.mxu0 0.0
        %1340 = vmatpush1.msra.mxu0 0.0
        %1341 = vmatprep.subr.mxu0 0.0
        %1342 = vmatpush1.msra.mxu0 0.0
        %1343 = vmatprep.subr.mxu0 0.0
        %1344 = vmatpush1.msra.mxu0 0.0
        %1345 = vmatprep.subr.mxu0 0.0
        %1346 = vmatpush1.msra.mxu0 0.0
        %1347 = vmatprep.subr.mxu0 0.0
        %1348 = vmatpush1.msra.mxu0 0.0
        %1349 = vmatprep.subr.mxu0 0.0
        %1350 = vmatpush1.msra.mxu0 0.0
        %1351 = vmatprep.subr.mxu0 0.0
        %1352 = vmatpush1.msra.mxu0 0.0
        %1353 = vmatprep.subr.mxu0 0.0
        %1354 = vmatpush1.msra.mxu0 0.0
        %1355 = vmatprep.subr.mxu0 0.0
        %1356 = vmatpush1.msra.mxu0 0.0
        %1357 = vmatprep.subr.mxu0 0.0
        %1358 = vmatpush1.msra.mxu0 0.0
        %1359 = vmatprep.subr.mxu0 0.0
        %1360 = vmatpush1.msra.mxu0 0.0
        %1361 = vmatprep.subr.mxu0 0.0
        %1362 = vmatpush1.msra.mxu0 0.0
        %1363 = vmatprep.subr.mxu0 0.0
        %1364 = vmatpush1.msra.mxu0 0.0
        %1365 = vmatprep.subr.mxu0 0.0
        %1366 = vmatpush1.msra.mxu0 0.0
        %1367 = vmatprep.subr.mxu0 0.0
        %1368 = vmatpush1.msra.mxu0 0.0
        %1369 = vmatprep.subr.mxu0 0.0
        %1370 = vmatpush1.msra.mxu0 0.0
        %1371 = vmatprep.subr.mxu0 0.0
        %1372 = vmatpush1.msra.mxu0 0.0
        %1373 = vmatprep.subr.mxu0 0.0
        %1374 = vmatpush1.msra.mxu0 0.0
        %1375 = vmatprep.subr.mxu0 0.0
        %1376 = vmatpush1.msra.mxu0 0.0
        %1377 = vmatprep.subr.mxu0 0.0
        %1378 = vmatpush1.msra.mxu0 0.0
        %1379 = vmatprep.mubr.f32.mxu0 0.0
        %1380 = vmatmul.mubr.f32.gmra.mrb[0].mxu0 %v1310
        %v1381 = vpop.f32.mrb[0].mxu0
        %v1382 = vadd.f32 %v1308, %v1381
        %v1383 = vpop.f32.mrb[0].mxu0
        %1384 = vmatprep.mubr.f32.mxu0 0.0
        %1385 = vmatmul.mubr.f32.gmra.mrb[0].mxu0 %v1313
        %v1386 = vpop.f32.mrb[0].mxu0
        %v1387 = vadd.f32 %v1308, %v1386
        %v1388 = vpop.f32.mrb[0].mxu0
        %1389 = vdwg.mxu0
        %v1390 = vmul.f32 %v1382, 0.5
        %v1391 = vmul.f32 %v1387, 0.5
        %v1392 = vmul.f32 %v1382, 0.044715
        %v1393 = vmul.f32 %v1387, 0.044715
        %v1394 = vmul.f32 %v1392, %v1382
        %v1395 = vmul.f32 %v1393, %v1387
        %v1396 = vmul.f32 %v1394, %v1382
        %v1397 = vmul.f32 %v1395, %v1387
        %v1398 = vadd.f32 %v1382, %v1396
        %v1399 = vadd.f32 %v1387, %v1397
        %v1400 = vmul.f32 %v1398, 0.7978846
        %v1401 = vmul.f32 %v1399, 0.7978846
        %v1402 = vtanh.pop %v1400
        %v1403 = vtanh.pop %v1401
        %v1404 = vadd.f32 %v1402, 1.0
        %v1405 = vadd.f32 %v1403, 1.0
        %v1406 = vmul.f32 %v1390, %v1404
        %v1407 = vmul.f32 %v1391, %v1405
        %v1408 = vlaneseq
        %v1409 = vshrl.u32 %v1408, 7
        %v1410 = vsub.s32 5, %v1409
        %v1411 = vrot.slane %v600, %v1410
        %vm1412 = vcmask 523264
        %v1414 = vsel %vm1412, %v1406, 0
        %v1417 = vsel %vm1412, %v1407, 0
        %1419 = vmatprep.subr.mxu0 0.0
        %1420 = vmatpush1.msra.mxu0 %v590
        %1421 = vmatprep.subr.mxu0 0.0
        %1422 = vmatpush1.msra.mxu0 %v591
        %1423 = vmatprep.subr.mxu0 0.0
        %1424 = vmatpush1.msra.mxu0 %v592
        %1425 = vmatprep.subr.mxu0 0.0
        %1426 = vmatpush1.msra.mxu0 %v593
        %1427 = vmatprep.subr.mxu0 0.0
        %1428 = vmatpush1.msra.mxu0 %v594
        %1429 = vmatprep.subr.mxu0 0.0
        %1430 = vmatpush1.msra.mxu0 %v595
        %1431 = vmatprep.subr.mxu0 0.0
        %1432 = vmatpush1.msra.mxu0 %v596
        %1433 = vmatprep.subr.mxu0 0.0
        %1434 = vmatpush1.msra.mxu0 %v597
        %1435 = vmatprep.subr.mxu0 0.0
        %1436 = vmatpush1.msra.mxu0 0.0
        %1437 = vmatprep.subr.mxu0 0.0
        %1438 = vmatpush1.msra.mxu0 0.0
        %1439 = vmatprep.subr.mxu0 0.0
        %1440 = vmatpush1.msra.mxu0 0.0
        %1441 = vmatprep.subr.mxu0 0.0
        %1442 = vmatpush1.msra.mxu0 0.0
        %1443 = vmatprep.subr.mxu0 0.0
        %1444 = vmatpush1.msra.mxu0 0.0
        %1445 = vmatprep.subr.mxu0 0.0
        %1446 = vmatpush1.msra.mxu0 0.0
        %1447 = vmatprep.subr.mxu0 0.0
        %1448 = vmatpush1.msra.mxu0 0.0
        %1449 = vmatprep.subr.mxu0 0.0
        %1450 = vmatpush1.msra.mxu0 0.0
        %1451 = vmatprep.subr.mxu0 0.0
        %1452 = vmatpush1.msra.mxu0 0.0
        %1453 = vmatprep.subr.mxu0 0.0
        %1454 = vmatpush1.msra.mxu0 0.0
        %1455 = vmatprep.subr.mxu0 0.0
        %1456 = vmatpush1.msra.mxu0 0.0
        %1457 = vmatprep.subr.mxu0 0.0
        %1458 = vmatpush1.msra.mxu0 0.0
        %1459 = vmatprep.subr.mxu0 0.0
        %1460 = vmatpush1.msra.mxu0 0.0
        %1461 = vmatprep.subr.mxu0 0.0
        %1462 = vmatpush1.msra.mxu0 0.0
        %1463 = vmatprep.subr.mxu0 0.0
        %1464 = vmatpush1.msra.mxu0 0.0
        %1465 = vmatprep.subr.mxu0 0.0
        %1466 = vmatpush1.msra.mxu0 0.0
        %1467 = vmatprep.subr.mxu0 0.0
        %1468 = vmatpush1.msra.mxu0 0.0
        %1469 = vmatprep.subr.mxu0 0.0
        %1470 = vmatpush1.msra.mxu0 0.0
        %1471 = vmatprep.subr.mxu0 0.0
        %1472 = vmatpush1.msra.mxu0 0.0
        %1473 = vmatprep.subr.mxu0 0.0
        %1474 = vmatpush1.msra.mxu0 0.0
        %1475 = vmatprep.subr.mxu0 0.0
        %1476 = vmatpush1.msra.mxu0 0.0
        %1477 = vmatprep.subr.mxu0 0.0
        %1478 = vmatpush1.msra.mxu0 0.0
        %1479 = vmatprep.subr.mxu0 0.0
        %1480 = vmatpush1.msra.mxu0 0.0
        %1481 = vmatprep.subr.mxu0 0.0
        %1482 = vmatpush1.msra.mxu0 0.0
        %1483 = vmatprep.mubr.f32.mxu0 0.0
        %1484 = vmatmul.mubr.f32.gmra.mrb[0].mxu0 %v1414
        %v1485 = vpop.f32.mrb[0].mxu0
        %v1486 = vadd.f32 %v1411, %v1485
        %v1487 = vpop.f32.mrb[0].mxu0
        %1488 = vmatprep.mubr.f32.mxu0 0.0
        %1489 = vmatmul.mubr.f32.gmra.mrb[0].mxu0 %v1417
        %v1490 = vpop.f32.mrb[0].mxu0
        %v1491 = vadd.f32 %v1411, %v1490
        %v1492 = vpop.f32.mrb[0].mxu0
        %1493 = vdwg.mxu0
        %v1494 = vadd.f32 %v1486, %v1303
        %v1495 = vadd.f32 %v1491, %v1304
        %v1496 = vsel %vm605, %v1494, 0.0
        %1497 = vadd.xlane.f32.xlu0 %v1496
        %v1498 = vpop.xlane.xlu0 %1497
        %v1499 = vsel %vm605, %v1495, 0.0
        %1500 = vadd.xlane.f32.xlu0 %v1499
        %v1501 = vpop.xlane.xlu0 %1500
        %v1502 = vmul.f32 %v1498, %v1272
        %v1503 = vmul.f32 %v1501, %v1272
        %v1504 = vsub.f32 %v1494, %v1502
        %v1505 = vsub.f32 %v1495, %v1503
        %v1506 = vmul.f32 %v1504, %v1504
        %v1507 = vmul.f32 %v1505, %v1505
        %v1508 = vsel %vm605, %v1506, 0.0
        %1509 = vadd.xlane.f32.xlu0 %v1508
        %v1510 = vpop.xlane.xlu0 %1509
        %v1511 = vsel %vm605, %v1507, 0.0
        %1512 = vadd.xlane.f32.xlu0 %v1511
        %v1513 = vpop.xlane.xlu0 %1512
        %v1514 = vmul.f32 %v1510, %v1272
        %v1515 = vmul.f32 %v1513, %v1272
        %v1516 = vadd.f32 %v1514, 1e-12
        %v1517 = vadd.f32 %v1515, 1e-12
        %v1518 = vrsqrt.pop %v1516
        %v1519 = vrsqrt.pop %v1517
        %v1520 = vmul.f32 %v1504, %v1518
        %v1521 = vmul.f32 %v1505, %v1519
        %v1522 = vlaneseq
        %v1523 = vshrl.u32 %v1522, 7
        %v1524 = vsub.s32 6, %v1523
        %v1525 = vrot.slane %v600, %v1524
        %v1526 = vmul.f32 %v1520, %v1525
        %v1527 = vmul.f32 %v1521, %v1525
        %v1528 = vlaneseq
        %v1529 = vshrl.u32 %v1528, 7
        %v1530 = vsub.s32 7, %v1529
        %v1531 = vrot.slane %v600, %v1530
        %v1532 = vadd.f32 %v1526, %v1531
        %v1533 = vadd.f32 %v1527, %v1531
        %1534 = vst.msk [vmem:[#allocation2] sm:$0xff] %vm605, %v1532
        %1535 = vst.msk [vmem:[#allocation2 + $0x8] sm:$0xff] %vm605, %v1533
        %p1536 = scmp.eq.s32.totalorder %s25, 1
        // Predicated region
        $region77: #{sentence_classifier_forward.1} parent=71 // pred_check
          %p1537 = pneg %p1536
        $region78: #{sentence_classifier_forward.1} parent=71 // pred_check_branch
          %1539 = sbr.rel (%p1537) target = $region80
        $region79: #{sentence_classifier_forward.1} parent=71 // pred_region
          %v1541 = vrot.slane %v1533, 7
          %vm1543 = vcmask 1040384
          %v1544 = vsel %vm1543, %v1532, %v1541
          %v1545 = vld [vmem:[%s9] sm:$0xff]
          %v1546 = vld [vmem:[%s9 + $0x8] sm:$0xff]
          %v1547 = vld [vmem:[%s9 + $0x10] sm:$0xff]
          %v1548 = vld [vmem:[%s9 + $0x18] sm:$0xff]
          %v1549 = vld [vmem:[%s10 + $0x2] sm:$0x1]
          %v1550 = vlaneseq
          %v1551 = vshrl.u32 %v1550, 7
          %v1552 = vsub.s32 0, %v1551
          %v1553 = vrot.slane %v1549, %v1552
          %v1555 = vsel %vm605, %v1544, 0
          %1557 = vmatprep.subr.mxu0 0.0
          %1558 = vmatpush1.msra.mxu0 %v1545
          %1559 = vmatprep.subr.mxu0 0.0
          %1560 = vmatpush1.msra.mxu0 %v1546
          %1561 = vmatprep.subr.mxu0 0.0
          %1562 = vmatpush1.msra.mxu0 %v1547
          %1563 = vmatprep.subr.mxu0 0.0
          %1564 = vmatpush1.msra.mxu0 %v1548
          %1565 = vmatprep.subr.mxu0 0.0
          %1566 = vmatpush1.msra.mxu0 0.0
          %1567 = vmatprep.subr.mxu0 0.0
          %1568 = vmatpush1.msra.mxu0 0.0
          %1569 = vmatprep.subr.mxu0 0.0
          %1570 = vmatpush1.msra.mxu0 0.0
          %1571 = vmatprep.subr.mxu0 0.0
          %1572 = vmatpush1.msra.mxu0 0.0
          %1573 = vmatprep.subr.mxu0 0.0
          %1574 = vmatpush1.msra.mxu0 0.0
          %1575 = vmatprep.subr.mxu0 0.0
          %1576 = vmatpush1.msra.mxu0 0.0
          %1577 = vmatprep.subr.mxu0 0.0
          %1578 = vmatpush1.msra.mxu0 0.0
          %1579 = vmatprep.subr.mxu0 0.0
          %1580 = vmatpush1.msra.mxu0 0.0
          %1581 = vmatprep.subr.mxu0 0.0
          %1582 = vmatpush1.msra.mxu0 0.0
          %1583 = vmatprep.subr.mxu0 0.0
          %1584 = vmatpush1.msra.mxu0 0.0
          %1585 = vmatprep.subr.mxu0 0.0
          %1586 = vmatpush1.msra.mxu0 0.0
          %1587 = vmatprep.subr.mxu0 0.0
          %1588 = vmatpush1.msra.mxu0 0.0
          %1589 = vmatprep.subr.mxu0 0.0
          %1590 = vmatpush1.msra.mxu0 0.0
          %1591 = vmatprep.subr.mxu0 0.0
          %1592 = vmatpush1.msra.mxu0 0.0
          %1593 = vmatprep.subr.mxu0 0.0
          %1594 = vmatpush1.msra.mxu0 0.0
          %1595 = vmatprep.subr.mxu0 0.0
          %1596 = vmatpush1.msra.mxu0 0.0
          %1597 = vmatprep.subr.mxu0 0.0
          %1598 = vmatpush1.msra.mxu0 0.0
          %1599 = vmatprep.subr.mxu0 0.0
          %1600 = vmatpush1.msra.mxu0 0.0
          %1601 = vmatprep.subr.mxu0 0.0
          %1602 = vmatpush1.msra.mxu0 0.0
          %1603 = vmatprep.subr.mxu0 0.0
          %1604 = vmatpush1.msra.mxu0 0.0
          %1605 = vmatprep.subr.mxu0 0.0
          %1606 = vmatpush1.msra.mxu0 0.0
          %1607 = vmatprep.subr.mxu0 0.0
          %1608 = vmatpush1.msra.mxu0 0.0
          %1609 = vmatprep.subr.mxu0 0.0
          %1610 = vmatpush1.msra.mxu0 0.0
          %1611 = vmatprep.subr.mxu0 0.0
          %1612 = vmatpush1.msra.mxu0 0.0
          %1613 = vmatprep.subr.mxu0 0.0
          %1614 = vmatpush1.msra.mxu0 0.0
          %1615 = vmatprep.subr.mxu0 0.0
          %1616 = vmatpush1.msra.mxu0 0.0
          %1617 = vmatprep.subr.mxu0 0.0
          %1618 = vmatpush1.msra.mxu0 0.0
          %1619 = vmatprep.subr.mxu0 0.0
          %1620 = vmatpush1.msra.mxu0 0.0
          %1621 = vmatprep.mubr.f32.mxu0 0.0
          %1622 = vmatmul.mubr.f32.gmra.mrb[0].mxu0 %v1555
          %v1623 = vpop.f32.mrb[0].mxu0
          %v1624 = vadd.f32 %v1553, %v1623
          %v1625 = vpop.f32.mrb[0].mxu0
          %1626 = vdwg.mxu0
          %v1627 = vtanh.pop %v1624
          %v1628 = vld [vmem:[%s11] sm:$0xff]
          %v1629 = vld [vmem:[%s11 + $0x8] sm:$0xff]
          %v1630 = vld [vmem:[%s11 + $0x10] sm:$0xff]
          %v1631 = vld [vmem:[%s11 + $0x18] sm:$0xff]
          %v1632 = vld [vmem:[%s12] sm:$0x1]
          %v1634 = vlaneseq
          %v1635 = vshrl.u32 %v1634, 7
          %v1636 = vsub.s32 0, %v1635
          %v1637 = vrot.slane %v1632, %v1636
          %v1640 = vsel %vm605, %v1627, 0
          %1642 = vmatprep.subr.mxu0 0.0
          %1643 = vmatpush1.msra.mxu0 %v1628
          %1644 = vmatprep.subr.mxu0 0.0
          %1645 = vmatpush1.msra.mxu0 %v1629
          %1646 = vmatprep.subr.mxu0 0.0
          %1647 = vmatpush1.msra.mxu0 %v1630
          %1648 = vmatprep.subr.mxu0 0.0
          %1649 = vmatpush1.msra.mxu0 %v1631
          %1650 = vmatprep.subr.mxu0 0.0
          %1651 = vmatpush1.msra.mxu0 0.0
          %1652 = vmatprep.subr.mxu0 0.0
          %1653 = vmatpush1.msra.mxu0 0.0
          %1654 = vmatprep.subr.mxu0 0.0
          %1655 = vmatpush1.msra.mxu0 0.0
          %1656 = vmatprep.subr.mxu0 0.0
          %1657 = vmatpush1.msra.mxu0 0.0
          %1658 = vmatprep.subr.mxu0 0.0
          %1659 = vmatpush1.msra.mxu0 0.0
          %1660 = vmatprep.subr.mxu0 0.0
          %1661 = vmatpush1.msra.mxu0 0.0
          %1662 = vmatprep.subr.mxu0 0.0
          %1663 = vmatpush1.msra.mxu0 0.0
          %1664 = vmatprep.subr.mxu0 0.0
          %1665 = vmatpush1.msra.mxu0 0.0
          %1666 = vmatprep.subr.mxu0 0.0
          %1667 = vmatpush1.msra.mxu0 0.0
          %1668 = vmatprep.subr.mxu0 0.0
          %1669 = vmatpush1.msra.mxu0 0.0
          %1670 = vmatprep.subr.mxu0 0.0
          %1671 = vmatpush1.msra.mxu0 0.0
          %1672 = vmatprep.subr.mxu0 0.0
          %1673 = vmatpush1.msra.mxu0 0.0
          %1674 = vmatprep.subr.mxu0 0.0
          %1675 = vmatpush1.msra.mxu0 0.0
          %1676 = vmatprep.subr.mxu0 0.0
          %1677 = vmatpush1.msra.mxu0 0.0
          %1678 = vmatprep.subr.mxu0 0.0
          %1679 = vmatpush1.msra.mxu0 0.0
          %1680 = vmatprep.subr.mxu0 0.0
          %1681 = vmatpush1.msra.mxu0 0.0
          %1682 = vmatprep.subr.mxu0 0.0
          %1683 = vmatpush1.msra.mxu0 0.0
          %1684 = vmatprep.subr.mxu0 0.0
          %1685 = vmatpush1.msra.mxu0 0.0
          %1686 = vmatprep.subr.mxu0 0.0
          %1687 = vmatpush1.msra.mxu0 0.0
          %1688 = vmatprep.subr.mxu0 0.0
          %1689 = vmatpush1.msra.mxu0 0.0
          %1690 = vmatprep.subr.mxu0 0.0
          %1691 = vmatpush1.msra.mxu0 0.0
          %1692 = vmatprep.subr.mxu0 0.0
          %1693 = vmatpush1.msra.mxu0 0.0
          %1694 = vmatprep.subr.mxu0 0.0
          %1695 = vmatpush1.msra.mxu0 0.0
          %1696 = vmatprep.subr.mxu0 0.0
          %1697 = vmatpush1.msra.mxu0 0.0
          %1698 = vmatprep.subr.mxu0 0.0
          %1699 = vmatpush1.msra.mxu0 0.0
          %1700 = vmatprep.subr.mxu0 0.0
          %1701 = vmatpush1.msra.mxu0 0.0
          %1702 = vmatprep.subr.mxu0 0.0
          %1703 = vmatpush1.msra.mxu0 0.0
          %1704 = vmatprep.subr.mxu0 0.0
          %1705 = vmatpush1.msra.mxu0 0.0
          %1706 = vmatprep.mubr.f32.mxu0 0.0
          %1707 = vmatmul.mubr.f32.gmra.mrb[0].mxu0 %v1640
          %v1708 = vpop.f32.mrb[0].mxu0
          %v1709 = vadd.f32 %v1637, %v1708
          %v1710 = vpop.f32.mrb[0].mxu0
          %1711 = vdwg.mxu0
          %vm1712 = vcmask 9216
          %1713 = vst.msk [vmem:[#allocation3] sm:$0x3] %vm1712, %v1709
        $region80: #{sentence_classifier_forward.1} parent=71 // pred_fallthru
          _
        // Predicated region
        $region81: #{sentence_classifier_forward.1} parent=71 // pred_check
          %p1714 = pneg %p311
        $region82: #{sentence_classifier_forward.1} parent=71 // pred_check_branch
          %1716 = sbr.rel (%p1714) target = $region84
        $region83: #{sentence_classifier_forward.1} parent=71 // pred_region
          %s1718 = ssub.s32 32, 32
          %1719 = vsyncadd [#allocation4], %s1718
          %s1721 = sshll.u32 [#allocation3], 4
          %s1722 = int_to_ptr.vmem [resolvable:$true] %s1721
          %1724 = dma.vmem_to_hbm [thread:$0]  %s1722, 32, %s13, [#allocation4]
        $region84: #{sentence_classifier_forward.1} parent=71 // pred_fallthru
          _
        // Predicated region
        $region85: #{sentence_classifier_forward.1} parent=71 // pred_check
          %p1725 = pneg %p311
        $region86: #{sentence_classifier_forward.1} parent=71 // pred_check_branch
          %1727 = sbr.rel (%p1725) target = $region88
        $region87: #{sentence_classifier_forward.1} parent=71 // pred_region
          %1728 = dma.done [#allocation4], 32
        $region88: #{sentence_classifier_forward.1} parent=71 // pred_fallthru
          _
      $region72: #{sentence_classifier_forward.1} parent=5 // pred_fallthru
        _
      %p1729 = scmp.le.s32.totalorder 2, %s20
      // Predicated region
      $region89: #{sentence_classifier_forward.1} parent=5 // pred_check
        %p1730 = pneg %p1729
      $region90: #{sentence_classifier_forward.1} parent=5 // pred_check_branch
        %1732 = sbr.rel (%p1730) target = $region92
      $region91: #{sentence_classifier_forward.1} parent=5 // pred_region
        %s1733 = ssub.s32 %s20, 2
      $region92: #{sentence_classifier_forward.1} parent=5 // pred_fallthru
        _
    $region6: #{sentence_classifier_forward.1} parent=1 // loop_footer
      %s24 = sadd.s32 1, %s20
    $region7: #{sentence_classifier_forward.1} parent=1 // loop_footer_branch
      %19 = sbr.rel target = $region3
    $region8: #{sentence_classifier_forward.1} parent=1 // loop_exit
      _
    %1734 = vsyncpa [#allocation4], 1
    %s1735 = scalar_lea.sflag [#allocation4], 1
    %1736 = vsyncpa %s1735, 1

</llo_original>
